<compile_context>
chip_gen: v7x
topology: tpu7x:2x2x1
jax: 0.10.0
libtpu: 0.0.40
codegen_flags: <defaults>
</compile_context>

<pallas_src>
import jax
import jax.numpy as jnp
from jax.experimental import pallas as pl
from jax.experimental.pallas import tpu as pltpu


def mha_kernel(x_ref, mask_ref,
               wq_ref, wk_ref, wv_ref, bq_ref, bk_ref, bv_ref,
               wfc_ref, bfc_ref, gamma_ref, beta_ref,
               out_ref, att_ref):
    # Shapes inside one grid step (b = batch tile, h = head):
    #   x_ref    : (Bt, L, D)   f32      (same block across h -> stays resident)
    #   mask_ref : (Bt, 1, L)   f32      (1 = keep, 0 = pad)
    #   wq/wk/wv : (1, D, dk)   bf16     (per-head column slice; scale folded in wq)
    #   bq/bk/bv : (1, 1, dk)   f32
    #   wfc_ref  : (1, dk, D)   bf16     (per-head row slice of W_fc)
    #   bfc/gamma/beta : (1, D) f32
    #   out_ref  : (Bt, L, D)   f32      (accumulated across the head axis)
    #   att_ref  : (Bt, 1, L, L)         (per-head attention weights)
    Bt, L, D = x_ref.shape
    dk = wq_ref.shape[2]
    h = pl.program_id(1)
    h_last = pl.num_programs(1) - 1

    # Per-head Q/K/V projections. Weights are pre-cast to bf16 on the host and
    # 1/sqrt(d_k) is folded into W_Q/b_Q, so there is no in-kernel weight cast
    # and no per-score scaling.
    x_bf = x_ref[...].astype(jnp.bfloat16).reshape(Bt * L, D)
    q = jnp.dot(x_bf, wq_ref[0], preferred_element_type=jnp.float32) + bq_ref[0]
    k = jnp.dot(x_bf, wk_ref[0], preferred_element_type=jnp.float32) + bk_ref[0]
    v = jnp.dot(x_bf, wv_ref[0], preferred_element_type=jnp.float32) + bv_ref[0]
    q = q.reshape(Bt, L, dk).astype(jnp.bfloat16)
    k = k.reshape(Bt, L, dk).astype(jnp.bfloat16)
    v = v.reshape(Bt, L, dk).astype(jnp.bfloat16)

    # Scores: contract the last dims directly (no transpose), batch over Bt.
    s = jax.lax.dot_general(
        q, k,
        dimension_numbers=(((2,), (2,)), ((0,), (0,))),
        preferred_element_type=jnp.float32)                      # (Bt, L, L) f32

    # Padding mask: exact masked_fill(mask == 0, -1e9) semantics (the PyTorch
    # module also fills with -1e9, so fully-padded rows give uniform attention
    # in both implementations).
    s = jnp.where(mask_ref[...] == 0.0, -1e9, s)

    # Softmax in f32 with an exact divide so the returned att matches
    # nn.Softmax (up to bf16 output storage).
    s = s - jnp.max(s, axis=-1, keepdims=True)
    e = jnp.exp(s)
    a = e / jnp.sum(e, axis=-1, keepdims=True)

    # TODO(synk): nn.Dropout on att and on the fc output is eval-mode identity.
    att_ref[...] = a.reshape(Bt, 1, L, L).astype(att_ref.dtype)

    # Per-head context, immediately folded through the matching rows of W_fc:
    #   fc(concat_h ctx_h) == sum_h ctx_h @ W_fc[h*dk:(h+1)*dk, :]
    ctx = jax.lax.dot_general(
        a.astype(jnp.bfloat16), v,
        dimension_numbers=(((2,), (1,)), ((0,), (0,))),
        preferred_element_type=jnp.float32)                      # (Bt, L, dk) f32
    part = jnp.dot(ctx.reshape(Bt * L, dk).astype(jnp.bfloat16), wfc_ref[0],
                   preferred_element_type=jnp.float32).reshape(Bt, L, D)

    # Accumulate the output projection across the head grid axis.
    # Full-D, lane-dense stores: no masked sub-128-lane scratch writes.
    @pl.when(h == 0)
    def _():
        out_ref[...] = part

    @pl.when(h != 0)
    def _():
        out_ref[...] = out_ref[...] + part

    # Finalize on the last head: fc bias, residual add, LayerNorm (eps = 1e-5,
    # matching torch defaults), all in f32.
    @pl.when(h == h_last)
    def _():
        acc = out_ref[...].reshape(Bt * L, D)
        acc = acc + bfc_ref[...]
        acc = acc + x_ref[...].reshape(Bt * L, D)                # residual (fresh read)
        mu = jnp.mean(acc, axis=-1, keepdims=True)
        var = jnp.mean((acc - mu) * (acc - mu), axis=-1, keepdims=True)
        acc = (acc - mu) * jax.lax.rsqrt(var + 1e-5)
        acc = acc * gamma_ref[...] + beta_ref[...]
        out_ref[...] = acc.reshape(Bt, L, D)


def _vmem_capacity_bytes():
    """Physical VMEM of the current chip; conservative 64 MiB fallback."""
    try:
        return int(pltpu.get_tpu_info().vmem_capacity_bytes)
    except Exception:
        return 64 * 1024 * 1024


def _step_bytes(bt, L, D, dk, att_bytes):
    """Rough per-grid-step VMEM footprint for the tile picker."""
    act = 4 * 4 * bt * L * D                       # x (dbl-buf) + out block + fc partial (f32)
    att = bt * L * L * (3 * 4 + 2 * att_bytes)     # score/exp temps (f32) + att block (dbl-buf)
    wts = 2 * 2 * 4 * D * dk                       # per-head q/k/v/fc weight slices (bf16, dbl-buf)
    return act + att + wts


def _pick_batch_tile(B, L, D, dk, att_bytes, vmem_cap):
    """Generation-aware batch tile.

    v7x-class chips (<= 64 MiB VMEM) have 2 TensorCores: keep >= 2 blocks on
    the parallel batch axis (when B > 1) and a tighter per-step budget.
    128-MiB parts (v5e/v6e) have a single TensorCore: allow Bt == B and a
    larger budget to amortize the ~0.35 us per-step pipeline overhead.
    """
    if vmem_cap <= 64 * 1024 * 1024:
        budget, min_steps = 20 * 1024 * 1024, 2
    else:
        budget, min_steps = 40 * 1024 * 1024, 1
    best = 1
    for bt in range(1, B + 1):
        if B % bt:
            continue
        if B > 1 and (B // bt) < min_steps:
            continue
        if _step_bytes(bt, L, D, dk, att_bytes) <= budget:
            best = bt
    return best


def _prep_params(params, D, H, dk):
    """Host-side weight prep: per-head slices, bf16, 1/sqrt(dk) folded into Q."""
    inv_scale = 1.0 / (float(dk) ** 0.5)

    def per_head_w(w):          # (D, D) -> (H, D, dk): columns grouped per head
        return jnp.transpose(w.reshape(D, H, dk), (1, 0, 2))

    def per_head_b(b):          # (1, D) -> (H, 1, dk)
        return b.reshape(H, dk)[:, None, :]

    wq = per_head_w(params["wq"] * inv_scale).astype(jnp.bfloat16)
    wk = per_head_w(params["wk"]).astype(jnp.bfloat16)
    wv = per_head_w(params["wv"]).astype(jnp.bfloat16)
    bq = per_head_b(params["bq"] * inv_scale).astype(jnp.float32)
    bk = per_head_b(params["bk"]).astype(jnp.float32)
    bv = per_head_b(params["bv"]).astype(jnp.float32)
    wfc = params["wfc"].reshape(H, dk, D).astype(jnp.bfloat16)   # per-head rows of W_fc
    return wq, wk, wv, bq, bk, bv, wfc


def multi_head_attention(x, mask, params, n_heads, batch_tile=None,
                         att_dtype=jnp.bfloat16):
    B, L, D = x.shape
    H = n_heads
    assert D % H == 0
    dk = D // H

    wq, wk, wv, bq, bk, bv, wfc = _prep_params(params, D, H, dk)
    bfc = params["bfc"].astype(jnp.float32)
    gamma = params["gamma"].astype(jnp.float32)
    beta = params["beta"].astype(jnp.float32)

    att_bytes = jnp.dtype(att_dtype).itemsize
    vmem_cap = _vmem_capacity_bytes()
    if batch_tile is None:
        batch_tile = _pick_batch_tile(B, L, D, dk, att_bytes, vmem_cap)
    Bt = batch_tile
    assert B % Bt == 0
    grid = (B // Bt, H)

    batch_blk = lambda b, h: (b, 0, 0)
    head_blk = lambda b, h: (h, 0, 0)
    full2 = lambda b, h: (0, 0)

    in_specs = [
        pl.BlockSpec((Bt, L, D), batch_blk),       # x
        pl.BlockSpec((Bt, 1, L), batch_blk),       # mask
        pl.BlockSpec((1, D, dk), head_blk),        # W_Q / scale  (bf16)
        pl.BlockSpec((1, D, dk), head_blk),        # W_K          (bf16)
        pl.BlockSpec((1, D, dk), head_blk),        # W_V          (bf16)
        pl.BlockSpec((1, 1, dk), head_blk),        # b_Q / scale
        pl.BlockSpec((1, 1, dk), head_blk),        # b_K
        pl.BlockSpec((1, 1, dk), head_blk),        # b_V
        pl.BlockSpec((1, dk, D), head_blk),        # W_fc rows    (bf16)
        pl.BlockSpec((1, D), full2),               # b_fc
        pl.BlockSpec((1, D), full2),               # ln gamma
        pl.BlockSpec((1, D), full2),               # ln beta
    ]
    out_specs = [
        pl.BlockSpec((Bt, L, D), batch_blk),               # out (accumulated over h)
        pl.BlockSpec((Bt, 1, L, L), lambda b, h: (b, h, 0, 0)),  # att, one head per step
    ]
    out_shape = [
        jax.ShapeDtypeStruct((B, L, D), jnp.float32),
        jax.ShapeDtypeStruct((B, H, L, L), att_dtype),
    ]

    # Clamp the VMEM budget to this chip's physical VMEM minus headroom
    # (the previous 96 MiB heuristic is unsafe on 64 MiB v7x parts).
    vmem_limit = int(max(vmem_cap // 2, vmem_cap - 16 * 1024 * 1024))

    fn = pl.pallas_call(
        mha_kernel,
        out_shape=out_shape,
        grid_spec=pltpu.PrefetchScalarGridSpec(
            num_scalar_prefetch=0,
            grid=grid,
            in_specs=in_specs,
            out_specs=out_specs),
        compiler_params=pltpu.CompilerParams(
            dimension_semantics=("parallel", "arbitrary"),
            vmem_limit_bytes=vmem_limit),
    )
    return fn(x, mask, wq, wk, wv, bq, bk, bv, wfc, bfc, gamma, beta)


def _reference(x, mask, params, H):
    """Pure-JAX f32 reference matching the PyTorch module (eval mode)."""
    B, L, D = x.shape
    dk = D // H
    q = x @ params["wq"] + params["bq"]
    k = x @ params["wk"] + params["bk"]
    v = x @ params["wv"] + params["bv"]

    def split(t):
        return t.reshape(B, L, H, dk).transpose(0, 2, 1, 3)

    q, k, v = split(q), split(k), split(v)
    s = (q / (dk ** 0.5)) @ k.transpose(0, 1, 3, 2)
    s = jnp.where(mask[:, None, :, :] == 0.0, -1e9, s)
    a = jax.nn.softmax(s, axis=-1)
    ctx = (a @ v).transpose(0, 2, 1, 3).reshape(B, L, D)
    out = ctx @ params["wfc"] + params["bfc"] + x
    mu = out.mean(-1, keepdims=True)
    var = ((out - mu) ** 2).mean(-1, keepdims=True)
    out = (out - mu) / jnp.sqrt(var + 1e-5)
    out = out * params["gamma"] + params["beta"]
    return out, a


if __name__ == "__main__":
    # Small shapes consistent with the module: batch=2, seq=8, d_model=32, heads=4
    B, L, D, H = 2, 8, 32, 4

    key = jax.random.PRNGKey(0)
    kx, kq, kk, kv, kf = jax.random.split(key, 5)

    x = jax.random.normal(kx, (B, L, D), dtype=jnp.float32)

    # padding mask: last 2 positions of batch element 1 are padding
    mask = jnp.ones((B, 1, L), dtype=jnp.float32)
    mask = mask.at[1, 0, L - 2:].set(0.0)

    s = 0.1
    params = {
        "wq": s * jax.random.normal(kq, (D, D), dtype=jnp.float32),
        "bq": jnp.zeros((1, D), dtype=jnp.float32),
        "wk": s * jax.random.normal(kk, (D, D), dtype=jnp.float32),
        "bk": jnp.zeros((1, D), dtype=jnp.float32),
        "wv": s * jax.random.normal(kv, (D, D), dtype=jnp.float32),
        "bv": jnp.zeros((1, D), dtype=jnp.float32),
        "wfc": s * jax.random.normal(kf, (D, D), dtype=jnp.float32),
        "bfc": jnp.zeros((1, D), dtype=jnp.float32),
        "gamma": jnp.ones((1, D), dtype=jnp.float32),
        "beta": jnp.zeros((1, D), dtype=jnp.float32),
    }

    out, att = multi_head_attention(x, mask, params, n_heads=H)
    jax.block_until_ready((out, att))

    assert out.shape == (B, L, D)
    assert att.shape == (B, H, L, L)
    assert bool(jnp.all(jnp.isfinite(out)))
    assert bool(jnp.all(jnp.isfinite(att)))

    # Loose-tolerance parity check vs an f32 reference (bf16 matmul inputs and
    # bf16 att storage introduce ~1e-3-level error at these magnitudes).
    ref_out, ref_att = _reference(x, mask, params, H)
    out_err = float(jnp.max(jnp.abs(out - ref_out)))
    att_err = float(jnp.max(jnp.abs(att.astype(jnp.float32) - ref_att)))
    assert out_err < 5e-2, f"out mismatch: {out_err}"
    assert att_err < 2e-2, f"att mismatch: {att_err}"

    print("KERNEL_OK")
</pallas_src>

<mosaic_0001>
module attributes {stable_mosaic.version = 11 : i64} {
  func.func @mha_kernel(%arg0: i32, %arg1: i32, %arg2: memref<1x8x32xf32, #tpu.memory_space<vmem>>, %arg3: memref<1x1x8xf32, #tpu.memory_space<vmem>>, %arg4: memref<1x32x8xbf16, #tpu.memory_space<vmem>>, %arg5: memref<1x32x8xbf16, #tpu.memory_space<vmem>>, %arg6: memref<1x32x8xbf16, #tpu.memory_space<vmem>>, %arg7: memref<1x1x8xf32, #tpu.memory_space<vmem>>, %arg8: memref<1x1x8xf32, #tpu.memory_space<vmem>>, %arg9: memref<1x1x8xf32, #tpu.memory_space<vmem>>, %arg10: memref<1x8x32xbf16, #tpu.memory_space<vmem>>, %arg11: memref<1x32xf32, #tpu.memory_space<vmem>>, %arg12: memref<1x32xf32, #tpu.memory_space<vmem>>, %arg13: memref<1x32xf32, #tpu.memory_space<vmem>>, %arg14: memref<1x8x32xf32, #tpu.memory_space<vmem>>, %arg15: memref<1x1x8x8xbf16, #tpu.memory_space<vmem>>) attributes {dimension_semantics = [#tpu.dimension_semantics<parallel>, #tpu.dimension_semantics<arbitrary>], iteration_bounds = array<i64: 2, 4>, scalar_prefetch = 0 : i64, scratch_operands = 0 : i64, tpu.core_type = #tpu.core_type<tc>, window_params = [{transform_indices = @transform_0, window_bounds = array<i64: 1, 8, 32>}, {transform_indices = @transform_1, window_bounds = array<i64: 1, 1, 8>}, {transform_indices = @transform_2, window_bounds = array<i64: 1, 32, 8>}, {transform_indices = @transform_3, window_bounds = array<i64: 1, 32, 8>}, {transform_indices = @transform_4, window_bounds = array<i64: 1, 32, 8>}, {transform_indices = @transform_5, window_bounds = array<i64: 1, 1, 8>}, {transform_indices = @transform_6, window_bounds = array<i64: 1, 1, 8>}, {transform_indices = @transform_7, window_bounds = array<i64: 1, 1, 8>}, {transform_indices = @transform_8, window_bounds = array<i64: 1, 8, 32>}, {pipeline_mode = #tpu.pipeline_mode<synchronous>, transform_indices = @transform_9, window_bounds = array<i64: 1, 32>}, {pipeline_mode = #tpu.pipeline_mode<synchronous>, transform_indices = @transform_10, window_bounds = array<i64: 1, 32>}, {pipeline_mode = #tpu.pipeline_mode<synchronous>, transform_indices = @transform_11, window_bounds = array<i64: 1, 32>}, {transform_indices = @transform_12, window_bounds = array<i64: 1, 8, 32>}, {transform_indices = @transform_13, window_bounds = array<i64: 1, 1, 8, 8>}]} {
    %c0 = arith.constant 0 : index
    %c0_0 = arith.constant 0 : index
    %c0_1 = arith.constant 0 : index
    %0 = vector.load %arg2[%c0, %c0_0, %c0_1] : memref<1x8x32xf32, #tpu.memory_space<vmem>>, vector<1x8x32xf32>
    %1 = arith.truncf %0 : vector<1x8x32xf32> to vector<1x8x32xbf16>
    %2 = vector.shape_cast %1 : vector<1x8x32xbf16> to vector<8x32xbf16>
    %c0_2 = arith.constant 0 : index
    %c0_3 = arith.constant 0 : index
    %c0_4 = arith.constant 0 : index
    %3 = vector.load %arg4[%c0_2, %c0_3, %c0_4] : memref<1x32x8xbf16, #tpu.memory_space<vmem>>, vector<1x32x8xbf16>
    %4 = vector.shape_cast %3 : vector<1x32x8xbf16> to vector<32x8xbf16>
    %cst = arith.constant dense<0.000000e+00> : vector<8x8xf32>
    %5 = tpu.matmul %2, %4, %cst {dimension_numbers = #tpu.dot_dimension_numbers<[1], [0], [0], [1], [0, 0, 1, 1], [], []>} : vector<8x32xbf16>, vector<32x8xbf16>, vector<8x8xf32> -> vector<8x8xf32>
    %c0_5 = arith.constant 0 : index
    %c0_6 = arith.constant 0 : index
    %c0_7 = arith.constant 0 : index
    %6 = vector.load %arg7[%c0_5, %c0_6, %c0_7] : memref<1x1x8xf32, #tpu.memory_space<vmem>>, vector<1x1x8xf32>
    %7 = vector.shape_cast %6 : vector<1x1x8xf32> to vector<1x8xf32>
    %8 = vector.broadcast %7 : vector<1x8xf32> to vector<8x8xf32>
    %9 = arith.addf %5, %8 : vector<8x8xf32>
    %c0_8 = arith.constant 0 : index
    %c0_9 = arith.constant 0 : index
    %c0_10 = arith.constant 0 : index
    %10 = vector.load %arg5[%c0_8, %c0_9, %c0_10] : memref<1x32x8xbf16, #tpu.memory_space<vmem>>, vector<1x32x8xbf16>
    %11 = vector.shape_cast %10 : vector<1x32x8xbf16> to vector<32x8xbf16>
    %cst_11 = arith.constant dense<0.000000e+00> : vector<8x8xf32>
    %12 = tpu.matmul %2, %11, %cst_11 {dimension_numbers = #tpu.dot_dimension_numbers<[1], [0], [0], [1], [0, 0, 1, 1], [], []>} : vector<8x32xbf16>, vector<32x8xbf16>, vector<8x8xf32> -> vector<8x8xf32>
    %c0_12 = arith.constant 0 : index
    %c0_13 = arith.constant 0 : index
    %c0_14 = arith.constant 0 : index
    %13 = vector.load %arg8[%c0_12, %c0_13, %c0_14] : memref<1x1x8xf32, #tpu.memory_space<vmem>>, vector<1x1x8xf32>
    %14 = vector.shape_cast %13 : vector<1x1x8xf32> to vector<1x8xf32>
    %15 = vector.broadcast %14 : vector<1x8xf32> to vector<8x8xf32>
    %16 = arith.addf %12, %15 : vector<8x8xf32>
    %c0_15 = arith.constant 0 : index
    %c0_16 = arith.constant 0 : index
    %c0_17 = arith.constant 0 : index
    %17 = vector.load %arg6[%c0_15, %c0_16, %c0_17] : memref<1x32x8xbf16, #tpu.memory_space<vmem>>, vector<1x32x8xbf16>
    %18 = vector.shape_cast %17 : vector<1x32x8xbf16> to vector<32x8xbf16>
    %cst_18 = arith.constant dense<0.000000e+00> : vector<8x8xf32>
    %19 = tpu.matmul %2, %18, %cst_18 {dimension_numbers = #tpu.dot_dimension_numbers<[1], [0], [0], [1], [0, 0, 1, 1], [], []>} : vector<8x32xbf16>, vector<32x8xbf16>, vector<8x8xf32> -> vector<8x8xf32>
    %c0_19 = arith.constant 0 : index
    %c0_20 = arith.constant 0 : index
    %c0_21 = arith.constant 0 : index
    %20 = vector.load %arg9[%c0_19, %c0_20, %c0_21] : memref<1x1x8xf32, #tpu.memory_space<vmem>>, vector<1x1x8xf32>
    %21 = vector.shape_cast %20 : vector<1x1x8xf32> to vector<1x8xf32>
    %22 = vector.broadcast %21 : vector<1x8xf32> to vector<8x8xf32>
    %23 = arith.addf %19, %22 : vector<8x8xf32>
    %24 = vector.shape_cast %9 : vector<8x8xf32> to vector<1x8x8xf32>
    %25 = arith.truncf %24 : vector<1x8x8xf32> to vector<1x8x8xbf16>
    %26 = vector.shape_cast %16 : vector<8x8xf32> to vector<1x8x8xf32>
    %27 = arith.truncf %26 : vector<1x8x8xf32> to vector<1x8x8xbf16>
    %28 = vector.shape_cast %23 : vector<8x8xf32> to vector<1x8x8xf32>
    %29 = arith.truncf %28 : vector<1x8x8xf32> to vector<1x8x8xbf16>
    %cst_22 = arith.constant dense<0.000000e+00> : vector<1x8x8xf32>
    %30 = tpu.matmul %25, %27, %cst_22 {dimension_numbers = #tpu.dot_dimension_numbers<[2], [2], [1], [1], [0, 0, 0, 1, 1, 1], [0], [0]>} : vector<1x8x8xbf16>, vector<1x8x8xbf16>, vector<1x8x8xf32> -> vector<1x8x8xf32>
    %c0_23 = arith.constant 0 : index
    %c0_24 = arith.constant 0 : index
    %c0_25 = arith.constant 0 : index
    %31 = vector.load %arg3[%c0_23, %c0_24, %c0_25] : memref<1x1x8xf32, #tpu.memory_space<vmem>>, vector<1x1x8xf32>
    %cst_26 = arith.constant 0.000000e+00 : f32
    %32 = vector.broadcast %cst_26 : f32 to vector<1x1x8xf32>
    %33 = arith.cmpf oeq, %31, %32 : vector<1x1x8xf32>
    %cst_27 = arith.constant -1.000000e+09 : f32
    %34 = vector.shape_cast %33 : vector<1x1x8xi1> to vector<1x1x8xi1>
    %35 = vector.broadcast %34 : vector<1x1x8xi1> to vector<1x8x8xi1>
    %36 = vector.broadcast %cst_27 : f32 to vector<1x8x8xf32>
    %37 = arith.select %35, %36, %30 : vector<1x8x8xi1>, vector<1x8x8xf32>
    %cst_28 = arith.constant dense<0xFF800000> : vector<1x8xf32>
    %38 = vector.multi_reduction <maximumf>, %37, %cst_28 [2] : vector<1x8x8xf32> to vector<1x8xf32>
    %39 = vector.shape_cast %38 : vector<1x8xf32> to vector<1x8x1xf32>
    %40 = vector.broadcast %39 : vector<1x8x1xf32> to vector<1x8x8xf32>
    %41 = arith.subf %37, %40 : vector<1x8x8xf32>
    %42 = math.exp %41 : vector<1x8x8xf32>
    %cst_29 = arith.constant dense<0.000000e+00> : vector<1x8xf32>
    %43 = vector.multi_reduction <add>, %42, %cst_29 [2] : vector<1x8x8xf32> to vector<1x8xf32>
    %44 = vector.shape_cast %43 : vector<1x8xf32> to vector<1x8x1xf32>
    %45 = vector.broadcast %44 : vector<1x8x1xf32> to vector<1x8x8xf32>
    %46 = arith.divf %42, %45 : vector<1x8x8xf32>
    %47 = vector.shape_cast %46 : vector<1x8x8xf32> to vector<1x1x8x8xf32>
    %48 = arith.truncf %47 : vector<1x1x8x8xf32> to vector<1x1x8x8xbf16>
    %c0_30 = arith.constant 0 : index
    %c0_31 = arith.constant 0 : index
    %c0_32 = arith.constant 0 : index
    %c0_33 = arith.constant 0 : index
    %49 = vector.load %arg15[%c0_30, %c0_31, %c0_32, %c0_33] : memref<1x1x8x8xbf16, #tpu.memory_space<vmem>>, vector<1x1x8x8xbf16>
    tpu.vector_store %arg15[%c0_30, %c0_31, %c0_32, %c0_33], %48 {strides = array<i32>} : memref<1x1x8x8xbf16, #tpu.memory_space<vmem>>, vector<1x1x8x8xbf16>,
    %50 = arith.truncf %46 : vector<1x8x8xf32> to vector<1x8x8xbf16>
    %cst_34 = arith.constant dense<0.000000e+00> : vector<1x8x8xf32>
    %51 = tpu.matmul %50, %29, %cst_34 {dimension_numbers = #tpu.dot_dimension_numbers<[2], [1], [1], [2], [0, 0, 0, 1, 1, 2], [0], [0]>} : vector<1x8x8xbf16>, vector<1x8x8xbf16>, vector<1x8x8xf32> -> vector<1x8x8xf32>
    %52 = vector.shape_cast %51 : vector<1x8x8xf32> to vector<8x8xf32>
    %53 = arith.truncf %52 : vector<8x8xf32> to vector<8x8xbf16>
    %c0_35 = arith.constant 0 : index
    %c0_36 = arith.constant 0 : index
    %c0_37 = arith.constant 0 : index
    %54 = vector.load %arg10[%c0_35, %c0_36, %c0_37] : memref<1x8x32xbf16, #tpu.memory_space<vmem>>, vector<1x8x32xbf16>
    %55 = vector.shape_cast %54 : vector<1x8x32xbf16> to vector<8x32xbf16>
    %cst_38 = arith.constant dense<0.000000e+00> : vector<8x32xf32>
    %56 = tpu.matmul %53, %55, %cst_38 {dimension_numbers = #tpu.dot_dimension_numbers<[1], [0], [0], [1], [0, 0, 1, 1], [], []>} : vector<8x8xbf16>, vector<8x32xbf16>, vector<8x32xf32> -> vector<8x32xf32>
    %57 = vector.shape_cast %56 : vector<8x32xf32> to vector<1x8x32xf32>
    %c0_i32 = arith.constant 0 : i32
    %58 = arith.cmpi eq, %arg1, %c0_i32 : i32
    %59 = arith.extui %58 : i1 to i32
    %c0_i32_39 = arith.constant 0 : i32
    %60 = arith.cmpi ne, %59, %c0_i32_39 : i32
    scf.if %60 {
      %c0_43 = arith.constant 0 : index
      %c0_44 = arith.constant 0 : index
      %c0_45 = arith.constant 0 : index
      %67 = vector.load %arg14[%c0_43, %c0_44, %c0_45] : memref<1x8x32xf32, #tpu.memory_space<vmem>>, vector<1x8x32xf32>
      tpu.vector_store %arg14[%c0_43, %c0_44, %c0_45], %57 {strides = array<i32>} : memref<1x8x32xf32, #tpu.memory_space<vmem>>, vector<1x8x32xf32>,
    } else {
    }
    %c0_i32_40 = arith.constant 0 : i32
    %61 = arith.cmpi ne, %arg1, %c0_i32_40 : i32
    %62 = arith.extui %61 : i1 to i32
    %c0_i32_41 = arith.constant 0 : i32
    %63 = arith.cmpi ne, %62, %c0_i32_41 : i32
    scf.if %63 {
      %c0_43 = arith.constant 0 : index
      %c0_44 = arith.constant 0 : index
      %c0_45 = arith.constant 0 : index
      %67 = vector.load %arg14[%c0_43, %c0_44, %c0_45] : memref<1x8x32xf32, #tpu.memory_space<vmem>>, vector<1x8x32xf32>
      %68 = arith.addf %67, %57 : vector<1x8x32xf32>
      %c0_46 = arith.constant 0 : index
      %c0_47 = arith.constant 0 : index
      %c0_48 = arith.constant 0 : index
      %69 = vector.load %arg14[%c0_46, %c0_47, %c0_48] : memref<1x8x32xf32, #tpu.memory_space<vmem>>, vector<1x8x32xf32>
      tpu.vector_store %arg14[%c0_46, %c0_47, %c0_48], %68 {strides = array<i32>} : memref<1x8x32xf32, #tpu.memory_space<vmem>>, vector<1x8x32xf32>,
    } else {
    }
    %c3_i32 = arith.constant 3 : i32
    %64 = arith.cmpi eq, %arg1, %c3_i32 : i32
    %65 = arith.extui %64 : i1 to i32
    %c0_i32_42 = arith.constant 0 : i32
    %66 = arith.cmpi ne, %65, %c0_i32_42 : i32
    scf.if %66 {
      %c0_43 = arith.constant 0 : index
      %c0_44 = arith.constant 0 : index
      %c0_45 = arith.constant 0 : index
      %67 = vector.load %arg14[%c0_43, %c0_44, %c0_45] : memref<1x8x32xf32, #tpu.memory_space<vmem>>, vector<1x8x32xf32>
      %68 = vector.shape_cast %67 : vector<1x8x32xf32> to vector<8x32xf32>
      %c0_46 = arith.constant 0 : index
      %c0_47 = arith.constant 0 : index
      %69 = vector.load %arg11[%c0_46, %c0_47] : memref<1x32xf32, #tpu.memory_space<vmem>>, vector<1x32xf32>
      %70 = vector.broadcast %69 : vector<1x32xf32> to vector<8x32xf32>
      %71 = arith.addf %68, %70 : vector<8x32xf32>
      %c0_48 = arith.constant 0 : index
      %c0_49 = arith.constant 0 : index
      %c0_50 = arith.constant 0 : index
      %72 = vector.load %arg2[%c0_48, %c0_49, %c0_50] : memref<1x8x32xf32, #tpu.memory_space<vmem>>, vector<1x8x32xf32>
      %73 = vector.shape_cast %72 : vector<1x8x32xf32> to vector<8x32xf32>
      %74 = arith.addf %71, %73 : vector<8x32xf32>
      %cst_51 = arith.constant dense<0.000000e+00> : vector<8xf32>
      %75 = vector.multi_reduction <add>, %74, %cst_51 [1] : vector<8x32xf32> to vector<8xf32>
      %76 = vector.shape_cast %75 : vector<8xf32> to vector<8x1xf32>
      %cst_52 = arith.constant 3.200000e+01 : f32
      %77 = vector.broadcast %cst_52 : f32 to vector<8x1xf32>
      %78 = arith.divf %76, %77 : vector<8x1xf32>
      %79 = vector.broadcast %78 : vector<8x1xf32> to vector<8x32xf32>
      %80 = arith.subf %74, %79 : vector<8x32xf32>
      %81 = vector.broadcast %78 : vector<8x1xf32> to vector<8x32xf32>
      %82 = arith.subf %74, %81 : vector<8x32xf32>
      %83 = arith.mulf %80, %82 : vector<8x32xf32>
      %cst_53 = arith.constant dense<0.000000e+00> : vector<8xf32>
      %84 = vector.multi_reduction <add>, %83, %cst_53 [1] : vector<8x32xf32> to vector<8xf32>
      %85 = vector.shape_cast %84 : vector<8xf32> to vector<8x1xf32>
      %cst_54 = arith.constant 3.200000e+01 : f32
      %86 = vector.broadcast %cst_54 : f32 to vector<8x1xf32>
      %87 = arith.divf %85, %86 : vector<8x1xf32>
      %88 = vector.broadcast %78 : vector<8x1xf32> to vector<8x32xf32>
      %89 = arith.subf %74, %88 : vector<8x32xf32>
      %cst_55 = arith.constant 9.99999974E-6 : f32
      %90 = vector.broadcast %cst_55 : f32 to vector<8x1xf32>
      %91 = arith.addf %87, %90 : vector<8x1xf32>
      %92 = math.rsqrt %91 : vector<8x1xf32>
      %93 = vector.broadcast %92 : vector<8x1xf32> to vector<8x32xf32>
      %94 = arith.mulf %89, %93 : vector<8x32xf32>
      %c0_56 = arith.constant 0 : index
      %c0_57 = arith.constant 0 : index
      %95 = vector.load %arg12[%c0_56, %c0_57] : memref<1x32xf32, #tpu.memory_space<vmem>>, vector<1x32xf32>
      %96 = vector.broadcast %95 : vector<1x32xf32> to vector<8x32xf32>
      %97 = arith.mulf %94, %96 : vector<8x32xf32>
      %c0_58 = arith.constant 0 : index
      %c0_59 = arith.constant 0 : index
      %98 = vector.load %arg13[%c0_58, %c0_59] : memref<1x32xf32, #tpu.memory_space<vmem>>, vector<1x32xf32>
      %99 = vector.broadcast %98 : vector<1x32xf32> to vector<8x32xf32>
      %100 = arith.addf %97, %99 : vector<8x32xf32>
      %101 = vector.shape_cast %100 : vector<8x32xf32> to vector<1x8x32xf32>
      %c0_60 = arith.constant 0 : index
      %c0_61 = arith.constant 0 : index
      %c0_62 = arith.constant 0 : index
      %102 = vector.load %arg14[%c0_60, %c0_61, %c0_62] : memref<1x8x32xf32, #tpu.memory_space<vmem>>, vector<1x8x32xf32>
      tpu.vector_store %arg14[%c0_60, %c0_61, %c0_62], %101 {strides = array<i32>} : memref<1x8x32xf32, #tpu.memory_space<vmem>>, vector<1x8x32xf32>,
    } else {
    }
    return
  }
  func.func @transform_0(%arg0: i32, %arg1: i32) -> (i32, i32, i32) {
    %c0_i32 = arith.constant 0 : i32
    %c0_i32_0 = arith.constant 0 : i32
    %c0_i32_1 = arith.constant 0 : i32
    return %arg0, %c0_i32, %c0_i32_0 : i32, i32, i32
  }
  func.func @transform_1(%arg0: i32, %arg1: i32) -> (i32, i32, i32) {
    %c0_i32 = arith.constant 0 : i32
    %c0_i32_0 = arith.constant 0 : i32
    %c0_i32_1 = arith.constant 0 : i32
    return %arg0, %c0_i32, %c0_i32_0 : i32, i32, i32
  }
  func.func @transform_2(%arg0: i32, %arg1: i32) -> (i32, i32, i32) {
    %c0_i32 = arith.constant 0 : i32
    %c0_i32_0 = arith.constant 0 : i32
    %c0_i32_1 = arith.constant 0 : i32
    return %arg1, %c0_i32, %c0_i32_0 : i32, i32, i32
  }
  func.func @transform_3(%arg0: i32, %arg1: i32) -> (i32, i32, i32) {
    %c0_i32 = arith.constant 0 : i32
    %c0_i32_0 = arith.constant 0 : i32
    %c0_i32_1 = arith.constant 0 : i32
    return %arg1, %c0_i32, %c0_i32_0 : i32, i32, i32
  }
  func.func @transform_4(%arg0: i32, %arg1: i32) -> (i32, i32, i32) {
    %c0_i32 = arith.constant 0 : i32
    %c0_i32_0 = arith.constant 0 : i32
    %c0_i32_1 = arith.constant 0 : i32
    return %arg1, %c0_i32, %c0_i32_0 : i32, i32, i32
  }
  func.func @transform_5(%arg0: i32, %arg1: i32) -> (i32, i32, i32) {
    %c0_i32 = arith.constant 0 : i32
    %c0_i32_0 = arith.constant 0 : i32
    %c0_i32_1 = arith.constant 0 : i32
    return %arg1, %c0_i32, %c0_i32_0 : i32, i32, i32
  }
  func.func @transform_6(%arg0: i32, %arg1: i32) -> (i32, i32, i32) {
    %c0_i32 = arith.constant 0 : i32
    %c0_i32_0 = arith.constant 0 : i32
    %c0_i32_1 = arith.constant 0 : i32
    return %arg1, %c0_i32, %c0_i32_0 : i32, i32, i32
  }
  func.func @transform_7(%arg0: i32, %arg1: i32) -> (i32, i32, i32) {
    %c0_i32 = arith.constant 0 : i32
    %c0_i32_0 = arith.constant 0 : i32
    %c0_i32_1 = arith.constant 0 : i32
    return %arg1, %c0_i32, %c0_i32_0 : i32, i32, i32
  }
  func.func @transform_8(%arg0: i32, %arg1: i32) -> (i32, i32, i32) {
    %c0_i32 = arith.constant 0 : i32
    %c0_i32_0 = arith.constant 0 : i32
    %c0_i32_1 = arith.constant 0 : i32
    return %arg1, %c0_i32, %c0_i32_0 : i32, i32, i32
  }
  func.func @transform_9(%arg0: i32, %arg1: i32) -> (i32, i32) {
    %c0_i32 = arith.constant 0 : i32
    %c0_i32_0 = arith.constant 0 : i32
    %c0_i32_1 = arith.constant 0 : i32
    return %c0_i32, %c0_i32_0 : i32, i32
  }
  func.func @transform_10(%arg0: i32, %arg1: i32) -> (i32, i32) {
    %c0_i32 = arith.constant 0 : i32
    %c0_i32_0 = arith.constant 0 : i32
    %c0_i32_1 = arith.constant 0 : i32
    return %c0_i32, %c0_i32_0 : i32, i32
  }
  func.func @transform_11(%arg0: i32, %arg1: i32) -> (i32, i32) {
    %c0_i32 = arith.constant 0 : i32
    %c0_i32_0 = arith.constant 0 : i32
    %c0_i32_1 = arith.constant 0 : i32
    return %c0_i32, %c0_i32_0 : i32, i32
  }
  func.func @transform_12(%arg0: i32, %arg1: i32) -> (i32, i32, i32) {
    %c0_i32 = arith.constant 0 : i32
    %c0_i32_0 = arith.constant 0 : i32
    %c0_i32_1 = arith.constant 0 : i32
    return %arg0, %c0_i32, %c0_i32_0 : i32, i32, i32
  }
  func.func @transform_13(%arg0: i32, %arg1: i32) -> (i32, i32, i32, i32) {
    %c0_i32 = arith.constant 0 : i32
    %c0_i32_0 = arith.constant 0 : i32
    %c0_i32_1 = arith.constant 0 : i32
    return %arg0, %arg1, %c0_i32, %c0_i32_0 : i32, i32, i32, i32
  }
}

</mosaic_0001>

<llo_original>
// kernel: tpu_custom_call.1
$region0: #{tpu_custom_call.1}
  #allocation0 [shape = 'u32[]', space=smem, size = 0x4, offset = 0x4, fixed_abs, tag = 'smem constant byte address 0x4 - core index']
  #allocation1 [shape = 'u32[144,128]{1,0:T(1,128)}', space=vmem, size = 0x12000, scoped, tag = 'internal scratch']
  %s0 = inlined_call_operand.vmem [shape: f32[2,8,32], index: 0, kind: input, shape index: {}]
  %s1 = inlined_call_operand.vmem [shape: f32[2,1,8], index: 1, kind: input, shape index: {}]
  %s2 = inlined_call_operand.vmem [shape: bf16[4,32,8], index: 2, kind: input, shape index: {}]
  %s3 = inlined_call_operand.vmem [shape: bf16[4,32,8], index: 3, kind: input, shape index: {}]
  %s4 = inlined_call_operand.vmem [shape: bf16[4,32,8], index: 4, kind: input, shape index: {}]
  %s5 = inlined_call_operand.vmem [shape: f32[4,1,8], index: 5, kind: input, shape index: {}]
  %s6 = inlined_call_operand.vmem [shape: f32[4,1,8], index: 6, kind: input, shape index: {}]
  %s7 = inlined_call_operand.vmem [shape: f32[4,1,8], index: 7, kind: input, shape index: {}]
  %s8 = inlined_call_operand.vmem [shape: bf16[4,8,32], index: 8, kind: input, shape index: {}]
  %s9 = inlined_call_operand.vmem [shape: f32[1,32], index: 9, kind: input, shape index: {}]
  %s10 = inlined_call_operand.vmem [shape: f32[1,32], index: 10, kind: input, shape index: {}]
  %s11 = inlined_call_operand.vmem [shape: f32[1,32], index: 11, kind: input, shape index: {}]
  %s12 = inlined_call_operand.hbm [shape: f32[2,8,32], index: 12, kind: output, shape index: {0}]
  %s13 = inlined_call_operand.hbm [shape: bf16[2,4,8,8], index: 13, kind: output, shape index: {1}]
  %14 = xla_tuple %s12, %s13
  %s15 = sld [smem:[#allocation0]]
  $region101: #{tpu_custom_call.1} parent=0
    _
  %s17 = ssub.s32 1, %s15
  %s18 = scalar_select 0, %s17, %s15
  $region1: #{tpu_custom_call.1} parent=0
    #allocation2 [shape = 'u8[8192]{0}', space=vmem, size = 0x2000, scoped, tag = 'output window, operand 0']
    #allocation3 [shape = 's32[2]{0}', space=sflag, size = 0x8, scoped, tag = 'scoped memory for tpu_custom_call.1']
    #allocation4 [shape = 'u8[4096]{0}', space=vmem, size = 0x1000, scoped, tag = 'output window, operand 1']
    #allocation5 [shape = 's32[2]{0}', space=sflag, size = 0x8, scoped, tag = 'scoped memory for tpu_custom_call.1']
    %19 = vsyncpa [#allocation3], 0
    %s20 = scalar_lea.sflag [#allocation3], 1
    %21 = vsyncpa %s20, 0
    %22 = vsyncpa [#allocation5], 0
    %s23 = scalar_lea.sflag [#allocation5], 1
    %24 = vsyncpa %s23, 0
    loop: start=0, step=1, limit=10
    $region2: #{tpu_custom_call.1} parent=1 // loop_pre_header
      _
    $region3: #{tpu_custom_call.1} parent=1 // loop_header
      %s26 = sphi 0, %s30
      %p27 = scmp.ge.s32.totalorder %s26, 10
      %s33 = sphi 0, %s45
      %s34 = sphi 0, %s41
      %s35 = sphi 0, %s33
      %s36 = sphi 0, %s34
      %s37 = sphi 0, %s35
      %s38 = sphi 0, %s36
      %s48 = sphi 0, %s50
      %s51 = sphi 0, %s48
      %s52 = sphi 0, %s51
      %s68 = sphi 0, %s52
      %s74 = sphi 0, %s76
      %s77 = sphi 0, %s74
      %s78 = sphi 0, %s77
      %s94 = sphi 0, %s78
      %s100 = sphi 0, %s102
      %s103 = sphi 0, %s100
      %s104 = sphi 0, %s103
      %s120 = sphi 0, %s104
      %s126 = sphi 0, %s128
      %s129 = sphi 0, %s126
      %s130 = sphi 0, %s129
      %s146 = sphi 0, %s130
      %s152 = sphi 0, %s154
      %s155 = sphi 0, %s152
      %s156 = sphi 0, %s155
      %s172 = sphi 0, %s156
      %s178 = sphi 0, %s180
      %s181 = sphi 0, %s178
      %s182 = sphi 0, %s181
      %s198 = sphi 0, %s182
      %s204 = sphi 0, %s206
      %s207 = sphi 0, %s204
      %s208 = sphi 0, %s207
      %s224 = sphi 0, %s208
      %s230 = sphi 0, %s232
      %s233 = sphi 0, %s230
      %s234 = sphi 0, %s233
      %s250 = sphi 0, %s234
      %s256 = sphi 0, %s258
      %s259 = sphi 0, %s256
      %s260 = sphi 0, %s259
      %s276 = sphi 0, %s260
      %s280 = sphi 0, %s280
      %s282 = sphi 0, %s280
      %s283 = sphi 0, %s282
      %s297 = sphi 0, %s283
      %s301 = sphi 0, %s301
      %s303 = sphi 0, %s301
      %s304 = sphi 0, %s303
      %s318 = sphi 0, %s304
      %s322 = sphi 0, %s322
      %s324 = sphi 0, %s322
      %s325 = sphi 0, %s324
      %s339 = sphi 0, %s325
      %s345 = sphi 0, %s347
      %s348 = sphi 0, %s345
      %s349 = sphi 0, %s348
      %s365 = sphi 0, %s349
      %s373 = sphi 0, %s375
      %s376 = sphi 0, %s373
      %s377 = sphi 0, %s376
      %s393 = sphi 0, %s377
    $region4: #{tpu_custom_call.1} parent=1 // loop_header_branch
      %29 = sbr.rel (%p27) target = $region8
    $region5: #{tpu_custom_call.1} parent=1 // loop_body
      %s31 = ssub.s32 %s26, 1
      %s32 = ssub.s32 %s26, 2
      %s39 = sadd.s32 1, %s34
      %p40 = scmp.ge.s32.totalorder %s39, 4
      %s41 = scalar_select %p40, 0, %s39
      %s42 = sadd.s32 1, %s33
      %s43 = scalar_select %p40, %s42, %s33
      %p44 = scmp.ge.s32.totalorder %s43, 2
      %s45 = scalar_select %p44, 0, %s43
      %s46 = ssub.s32 %s33, %s45
      %p47 = scmp.eq.s32.totalorder %s46, 0
      %s49 = sadd.s32 %s48, 1
      %s50 = scalar_select %p47, %s48, %s49
      %p53 = pneg %p47
      %p54 = scmp.eq.s32.totalorder %s26, 7
      %p55 = por %p53, %p54
      %p56 = scmp.ne.s32.totalorder %s48, %s51
      %p57 = scmp.eq.s32.totalorder %s26, 0
      %p58 = por %p56, %p57
      %p59 = scmp.ne.s32.totalorder %s48, %s51
      %p60 = scmp.eq.s32.totalorder %s31, 7
      %p61 = por %p59, %p60
      %p62 = scmp.ne.s32.totalorder %s51, %s52
      %p63 = scmp.eq.s32.totalorder %s31, 0
      %p64 = por %p62, %p63
      %p65 = scmp.ne.s32.totalorder %s51, %s52
      %p66 = scmp.eq.s32.totalorder %s32, 7
      %p67 = por %p65, %p66
      %p69 = scmp.ne.s32.totalorder %s52, %s68
      %p70 = scmp.eq.s32.totalorder %s32, 0
      %p71 = por %p69, %p70
      %s72 = ssub.s32 %s33, %s45
      %p73 = scmp.eq.s32.totalorder %s72, 0
      %s75 = sadd.s32 %s74, 1
      %s76 = scalar_select %p73, %s74, %s75
      %p79 = pneg %p73
      %p80 = scmp.eq.s32.totalorder %s26, 7
      %p81 = por %p79, %p80
      %p82 = scmp.ne.s32.totalorder %s74, %s77
      %p83 = scmp.eq.s32.totalorder %s26, 0
      %p84 = por %p82, %p83
      %p85 = scmp.ne.s32.totalorder %s74, %s77
      %p86 = scmp.eq.s32.totalorder %s31, 7
      %p87 = por %p85, %p86
      %p88 = scmp.ne.s32.totalorder %s77, %s78
      %p89 = scmp.eq.s32.totalorder %s31, 0
      %p90 = por %p88, %p89
      %p91 = scmp.ne.s32.totalorder %s77, %s78
      %p92 = scmp.eq.s32.totalorder %s32, 7
      %p93 = por %p91, %p92
      %p95 = scmp.ne.s32.totalorder %s78, %s94
      %p96 = scmp.eq.s32.totalorder %s32, 0
      %p97 = por %p95, %p96
      %s98 = ssub.s32 %s34, %s41
      %p99 = scmp.eq.s32.totalorder %s98, 0
      %s101 = sadd.s32 %s100, 1
      %s102 = scalar_select %p99, %s100, %s101
      %p105 = pneg %p99
      %p106 = scmp.eq.s32.totalorder %s26, 7
      %p107 = por %p105, %p106
      %p108 = scmp.ne.s32.totalorder %s100, %s103
      %p109 = scmp.eq.s32.totalorder %s26, 0
      %p110 = por %p108, %p109
      %p111 = scmp.ne.s32.totalorder %s100, %s103
      %p112 = scmp.eq.s32.totalorder %s31, 7
      %p113 = por %p111, %p112
      %p114 = scmp.ne.s32.totalorder %s103, %s104
      %p115 = scmp.eq.s32.totalorder %s31, 0
      %p116 = por %p114, %p115
      %p117 = scmp.ne.s32.totalorder %s103, %s104
      %p118 = scmp.eq.s32.totalorder %s32, 7
      %p119 = por %p117, %p118
      %p121 = scmp.ne.s32.totalorder %s104, %s120
      %p122 = scmp.eq.s32.totalorder %s32, 0
      %p123 = por %p121, %p122
      %s124 = ssub.s32 %s34, %s41
      %p125 = scmp.eq.s32.totalorder %s124, 0
      %s127 = sadd.s32 %s126, 1
      %s128 = scalar_select %p125, %s126, %s127
      %p131 = pneg %p125
      %p132 = scmp.eq.s32.totalorder %s26, 7
      %p133 = por %p131, %p132
      %p134 = scmp.ne.s32.totalorder %s126, %s129
      %p135 = scmp.eq.s32.totalorder %s26, 0
      %p136 = por %p134, %p135
      %p137 = scmp.ne.s32.totalorder %s126, %s129
      %p138 = scmp.eq.s32.totalorder %s31, 7
      %p139 = por %p137, %p138
      %p140 = scmp.ne.s32.totalorder %s129, %s130
      %p141 = scmp.eq.s32.totalorder %s31, 0
      %p142 = por %p140, %p141
      %p143 = scmp.ne.s32.totalorder %s129, %s130
      %p144 = scmp.eq.s32.totalorder %s32, 7
      %p145 = por %p143, %p144
      %p147 = scmp.ne.s32.totalorder %s130, %s146
      %p148 = scmp.eq.s32.totalorder %s32, 0
      %p149 = por %p147, %p148
      %s150 = ssub.s32 %s34, %s41
      %p151 = scmp.eq.s32.totalorder %s150, 0
      %s153 = sadd.s32 %s152, 1
      %s154 = scalar_select %p151, %s152, %s153
      %p157 = pneg %p151
      %p158 = scmp.eq.s32.totalorder %s26, 7
      %p159 = por %p157, %p158
      %p160 = scmp.ne.s32.totalorder %s152, %s155
      %p161 = scmp.eq.s32.totalorder %s26, 0
      %p162 = por %p160, %p161
      %p163 = scmp.ne.s32.totalorder %s152, %s155
      %p164 = scmp.eq.s32.totalorder %s31, 7
      %p165 = por %p163, %p164
      %p166 = scmp.ne.s32.totalorder %s155, %s156
      %p167 = scmp.eq.s32.totalorder %s31, 0
      %p168 = por %p166, %p167
      %p169 = scmp.ne.s32.totalorder %s155, %s156
      %p170 = scmp.eq.s32.totalorder %s32, 7
      %p171 = por %p169, %p170
      %p173 = scmp.ne.s32.totalorder %s156, %s172
      %p174 = scmp.eq.s32.totalorder %s32, 0
      %p175 = por %p173, %p174
      %s176 = ssub.s32 %s34, %s41
      %p177 = scmp.eq.s32.totalorder %s176, 0
      %s179 = sadd.s32 %s178, 1
      %s180 = scalar_select %p177, %s178, %s179
      %p183 = pneg %p177
      %p184 = scmp.eq.s32.totalorder %s26, 7
      %p185 = por %p183, %p184
      %p186 = scmp.ne.s32.totalorder %s178, %s181
      %p187 = scmp.eq.s32.totalorder %s26, 0
      %p188 = por %p186, %p187
      %p189 = scmp.ne.s32.totalorder %s178, %s181
      %p190 = scmp.eq.s32.totalorder %s31, 7
      %p191 = por %p189, %p190
      %p192 = scmp.ne.s32.totalorder %s181, %s182
      %p193 = scmp.eq.s32.totalorder %s31, 0
      %p194 = por %p192, %p193
      %p195 = scmp.ne.s32.totalorder %s181, %s182
      %p196 = scmp.eq.s32.totalorder %s32, 7
      %p197 = por %p195, %p196
      %p199 = scmp.ne.s32.totalorder %s182, %s198
      %p200 = scmp.eq.s32.totalorder %s32, 0
      %p201 = por %p199, %p200
      %s202 = ssub.s32 %s34, %s41
      %p203 = scmp.eq.s32.totalorder %s202, 0
      %s205 = sadd.s32 %s204, 1
      %s206 = scalar_select %p203, %s204, %s205
      %p209 = pneg %p203
      %p210 = scmp.eq.s32.totalorder %s26, 7
      %p211 = por %p209, %p210
      %p212 = scmp.ne.s32.totalorder %s204, %s207
      %p213 = scmp.eq.s32.totalorder %s26, 0
      %p214 = por %p212, %p213
      %p215 = scmp.ne.s32.totalorder %s204, %s207
      %p216 = scmp.eq.s32.totalorder %s31, 7
      %p217 = por %p215, %p216
      %p218 = scmp.ne.s32.totalorder %s207, %s208
      %p219 = scmp.eq.s32.totalorder %s31, 0
      %p220 = por %p218, %p219
      %p221 = scmp.ne.s32.totalorder %s207, %s208
      %p222 = scmp.eq.s32.totalorder %s32, 7
      %p223 = por %p221, %p222
      %p225 = scmp.ne.s32.totalorder %s208, %s224
      %p226 = scmp.eq.s32.totalorder %s32, 0
      %p227 = por %p225, %p226
      %s228 = ssub.s32 %s34, %s41
      %p229 = scmp.eq.s32.totalorder %s228, 0
      %s231 = sadd.s32 %s230, 1
      %s232 = scalar_select %p229, %s230, %s231
      %p235 = pneg %p229
      %p236 = scmp.eq.s32.totalorder %s26, 7
      %p237 = por %p235, %p236
      %p238 = scmp.ne.s32.totalorder %s230, %s233
      %p239 = scmp.eq.s32.totalorder %s26, 0
      %p240 = por %p238, %p239
      %p241 = scmp.ne.s32.totalorder %s230, %s233
      %p242 = scmp.eq.s32.totalorder %s31, 7
      %p243 = por %p241, %p242
      %p244 = scmp.ne.s32.totalorder %s233, %s234
      %p245 = scmp.eq.s32.totalorder %s31, 0
      %p246 = por %p244, %p245
      %p247 = scmp.ne.s32.totalorder %s233, %s234
      %p248 = scmp.eq.s32.totalorder %s32, 7
      %p249 = por %p247, %p248
      %p251 = scmp.ne.s32.totalorder %s234, %s250
      %p252 = scmp.eq.s32.totalorder %s32, 0
      %p253 = por %p251, %p252
      %s254 = ssub.s32 %s34, %s41
      %p255 = scmp.eq.s32.totalorder %s254, 0
      %s257 = sadd.s32 %s256, 1
      %s258 = scalar_select %p255, %s256, %s257
      %p261 = pneg %p255
      %p262 = scmp.eq.s32.totalorder %s26, 7
      %p263 = por %p261, %p262
      %p264 = scmp.ne.s32.totalorder %s256, %s259
      %p265 = scmp.eq.s32.totalorder %s26, 0
      %p266 = por %p264, %p265
      %p267 = scmp.ne.s32.totalorder %s256, %s259
      %p268 = scmp.eq.s32.totalorder %s31, 7
      %p269 = por %p267, %p268
      %p270 = scmp.ne.s32.totalorder %s259, %s260
      %p271 = scmp.eq.s32.totalorder %s31, 0
      %p272 = por %p270, %p271
      %p273 = scmp.ne.s32.totalorder %s259, %s260
      %p274 = scmp.eq.s32.totalorder %s32, 7
      %p275 = por %p273, %p274
      %p277 = scmp.ne.s32.totalorder %s260, %s276
      %p278 = scmp.eq.s32.totalorder %s32, 0
      %p279 = por %p277, %p278
      %s281 = sadd.s32 %s280, 1
      %p284 = scmp.eq.s32.totalorder %s26, 7
      %p285 = scmp.ne.s32.totalorder %s280, %s282
      %p286 = scmp.eq.s32.totalorder %s26, 0
      %p287 = por %p285, %p286
      %p288 = scmp.ne.s32.totalorder %s280, %s282
      %p289 = scmp.eq.s32.totalorder %s31, 7
      %p290 = por %p288, %p289
      %p291 = scmp.ne.s32.totalorder %s282, %s283
      %p292 = scmp.eq.s32.totalorder %s31, 0
      %p293 = por %p291, %p292
      %p294 = scmp.ne.s32.totalorder %s282, %s283
      %p295 = scmp.eq.s32.totalorder %s32, 7
      %p296 = por %p294, %p295
      %p298 = scmp.ne.s32.totalorder %s283, %s297
      %p299 = scmp.eq.s32.totalorder %s32, 0
      %p300 = por %p298, %p299
      %s302 = sadd.s32 %s301, 1
      %p305 = scmp.eq.s32.totalorder %s26, 7
      %p306 = scmp.ne.s32.totalorder %s301, %s303
      %p307 = scmp.eq.s32.totalorder %s26, 0
      %p308 = por %p306, %p307
      %p309 = scmp.ne.s32.totalorder %s301, %s303
      %p310 = scmp.eq.s32.totalorder %s31, 7
      %p311 = por %p309, %p310
      %p312 = scmp.ne.s32.totalorder %s303, %s304
      %p313 = scmp.eq.s32.totalorder %s31, 0
      %p314 = por %p312, %p313
      %p315 = scmp.ne.s32.totalorder %s303, %s304
      %p316 = scmp.eq.s32.totalorder %s32, 7
      %p317 = por %p315, %p316
      %p319 = scmp.ne.s32.totalorder %s304, %s318
      %p320 = scmp.eq.s32.totalorder %s32, 0
      %p321 = por %p319, %p320
      %s323 = sadd.s32 %s322, 1
      %p326 = scmp.eq.s32.totalorder %s26, 7
      %p327 = scmp.ne.s32.totalorder %s322, %s324
      %p328 = scmp.eq.s32.totalorder %s26, 0
      %p329 = por %p327, %p328
      %p330 = scmp.ne.s32.totalorder %s322, %s324
      %p331 = scmp.eq.s32.totalorder %s31, 7
      %p332 = por %p330, %p331
      %p333 = scmp.ne.s32.totalorder %s324, %s325
      %p334 = scmp.eq.s32.totalorder %s31, 0
      %p335 = por %p333, %p334
      %p336 = scmp.ne.s32.totalorder %s324, %s325
      %p337 = scmp.eq.s32.totalorder %s32, 7
      %p338 = por %p336, %p337
      %p340 = scmp.ne.s32.totalorder %s325, %s339
      %p341 = scmp.eq.s32.totalorder %s32, 0
      %p342 = por %p340, %p341
      %s343 = ssub.s32 %s33, %s45
      %p344 = scmp.eq.s32.totalorder %s343, 0
      %s346 = sadd.s32 %s345, 1
      %s347 = scalar_select %p344, %s345, %s346
      %p350 = pneg %p344
      %p351 = scmp.eq.s32.totalorder %s26, 7
      %p352 = por %p350, %p351
      %p353 = scmp.ne.s32.totalorder %s345, %s348
      %p354 = scmp.eq.s32.totalorder %s26, 0
      %p355 = por %p353, %p354
      %p356 = scmp.ne.s32.totalorder %s345, %s348
      %p357 = scmp.eq.s32.totalorder %s31, 7
      %p358 = por %p356, %p357
      %p359 = scmp.ne.s32.totalorder %s348, %s349
      %p360 = scmp.eq.s32.totalorder %s31, 0
      %p361 = por %p359, %p360
      %p362 = scmp.ne.s32.totalorder %s348, %s349
      %p363 = scmp.eq.s32.totalorder %s32, 7
      %p364 = por %p362, %p363
      %p366 = scmp.ne.s32.totalorder %s349, %s365
      %p367 = scmp.eq.s32.totalorder %s32, 0
      %p368 = por %p366, %p367
      %s369 = ssub.s32 %s33, %s45
      %s370 = ssub.s32 %s34, %s41
      %s371 = sor.u32 %s369, %s370
      %p372 = scmp.eq.s32.totalorder %s371, 0
      %s374 = sadd.s32 %s373, 1
      %s375 = scalar_select %p372, %s373, %s374
      %p378 = pneg %p372
      %p379 = scmp.eq.s32.totalorder %s26, 7
      %p380 = por %p378, %p379
      %p381 = scmp.ne.s32.totalorder %s373, %s376
      %p382 = scmp.eq.s32.totalorder %s26, 0
      %p383 = por %p381, %p382
      %p384 = scmp.ne.s32.totalorder %s373, %s376
      %p385 = scmp.eq.s32.totalorder %s31, 7
      %p386 = por %p384, %p385
      %p387 = scmp.ne.s32.totalorder %s376, %s377
      %p388 = scmp.eq.s32.totalorder %s31, 0
      %p389 = por %p387, %p388
      %p390 = scmp.ne.s32.totalorder %s376, %s377
      %p391 = scmp.eq.s32.totalorder %s32, 7
      %p392 = por %p390, %p391
      %p394 = scmp.ne.s32.totalorder %s377, %s393
      %p395 = scmp.eq.s32.totalorder %s32, 0
      %p396 = por %p394, %p395
      %p397 = scmp.le.s32.totalorder 1, %s26
      %p398 = scmp.lt.s32.totalorder %s26, 9
      %p399 = pnand %p397, %p398
      %p400 = pneg %p399
      // Predicated region
      $region9: #{tpu_custom_call.1} parent=5 // pred_check
        _
      $region10: #{tpu_custom_call.1} parent=5 // pred_check_branch
        %402 = sbr.rel (%p399) target = $region12
      $region11: #{tpu_custom_call.1} parent=5 // pred_region
        %s403 = ssub.s32 %s26, 1
        // Predicated region
        $region13: #{tpu_custom_call.1} parent=11 // pred_check
          %p404 = pneg %p293
        $region14: #{tpu_custom_call.1} parent=11 // pred_check_branch
          %406 = sbr.rel (%p404) target = $region16
        $region15: #{tpu_custom_call.1} parent=11 // pred_region
          _
        $region16: #{tpu_custom_call.1} parent=11 // pred_fallthru
          _
        // Predicated region
        $region17: #{tpu_custom_call.1} parent=11 // pred_check
          %p407 = pneg %p314
        $region18: #{tpu_custom_call.1} parent=11 // pred_check_branch
          %409 = sbr.rel (%p407) target = $region20
        $region19: #{tpu_custom_call.1} parent=11 // pred_region
          _
        $region20: #{tpu_custom_call.1} parent=11 // pred_fallthru
          _
        // Predicated region
        $region21: #{tpu_custom_call.1} parent=11 // pred_check
          %p410 = pneg %p335
        $region22: #{tpu_custom_call.1} parent=11 // pred_check_branch
          %412 = sbr.rel (%p410) target = $region24
        $region23: #{tpu_custom_call.1} parent=11 // pred_region
          _
        $region24: #{tpu_custom_call.1} parent=11 // pred_fallthru
          _
      $region12: #{tpu_custom_call.1} parent=5 // pred_fallthru
        _
      %p413 = scmp.lt.s32.totalorder %s26, 8
      // Predicated region
      $region25: #{tpu_custom_call.1} parent=5 // pred_check
        %p414 = pneg %p413
      $region26: #{tpu_custom_call.1} parent=5 // pred_check_branch
        %416 = sbr.rel (%p414) target = $region28
      $region27: #{tpu_custom_call.1} parent=5 // pred_region
        // Predicated region
        $region29: #{tpu_custom_call.1} parent=27 // pred_check
          %p417 = pneg %p58
        $region30: #{tpu_custom_call.1} parent=27 // pred_check_branch
          %419 = sbr.rel (%p417) target = $region32
        $region31: #{tpu_custom_call.1} parent=27 // pred_region
          %p420 = scmp.lt.s32.totalorder %s33, 1
          %s421 = scalar_select %p420, %s33, 1
          %s422 = smul.addr %s421, 8
          %s423 = scalar_lea.vmem %s0, %s422
        $region32: #{tpu_custom_call.1} parent=27 // pred_fallthru
          _
        // Predicated region
        $region33: #{tpu_custom_call.1} parent=27 // pred_check
          %p424 = pneg %p84
        $region34: #{tpu_custom_call.1} parent=27 // pred_check_branch
          %426 = sbr.rel (%p424) target = $region36
        $region35: #{tpu_custom_call.1} parent=27 // pred_region
          %p427 = scmp.lt.s32.totalorder %s33, 1
          %s428 = scalar_select %p427, %s33, 1
          %s429 = scalar_lea.vmem %s1, %s428
        $region36: #{tpu_custom_call.1} parent=27 // pred_fallthru
          _
        // Predicated region
        $region37: #{tpu_custom_call.1} parent=27 // pred_check
          %p430 = pneg %p110
        $region38: #{tpu_custom_call.1} parent=27 // pred_check_branch
          %432 = sbr.rel (%p430) target = $region40
        $region39: #{tpu_custom_call.1} parent=27 // pred_region
          %p433 = scmp.lt.s32.totalorder %s34, 3
          %s434 = scalar_select %p433, %s34, 3
          %s435 = smul.addr %s434, 4
          %s436 = smul.addr %s435, 4
          %s437 = scalar_lea.vmem %s2, %s436
        $region40: #{tpu_custom_call.1} parent=27 // pred_fallthru
          _
        // Predicated region
        $region41: #{tpu_custom_call.1} parent=27 // pred_check
          %p438 = pneg %p136
        $region42: #{tpu_custom_call.1} parent=27 // pred_check_branch
          %440 = sbr.rel (%p438) target = $region44
        $region43: #{tpu_custom_call.1} parent=27 // pred_region
          %p441 = scmp.lt.s32.totalorder %s34, 3
          %s442 = scalar_select %p441, %s34, 3
          %s443 = smul.addr %s442, 4
          %s444 = smul.addr %s443, 4
          %s445 = scalar_lea.vmem %s3, %s444
        $region44: #{tpu_custom_call.1} parent=27 // pred_fallthru
          _
        // Predicated region
        $region45: #{tpu_custom_call.1} parent=27 // pred_check
          %p446 = pneg %p162
        $region46: #{tpu_custom_call.1} parent=27 // pred_check_branch
          %448 = sbr.rel (%p446) target = $region48
        $region47: #{tpu_custom_call.1} parent=27 // pred_region
          %p449 = scmp.lt.s32.totalorder %s34, 3
          %s450 = scalar_select %p449, %s34, 3
          %s451 = smul.addr %s450, 4
          %s452 = smul.addr %s451, 4
          %s453 = scalar_lea.vmem %s4, %s452
        $region48: #{tpu_custom_call.1} parent=27 // pred_fallthru
          _
        // Predicated region
        $region49: #{tpu_custom_call.1} parent=27 // pred_check
          %p454 = pneg %p188
        $region50: #{tpu_custom_call.1} parent=27 // pred_check_branch
          %456 = sbr.rel (%p454) target = $region52
        $region51: #{tpu_custom_call.1} parent=27 // pred_region
          %p457 = scmp.lt.s32.totalorder %s34, 3
          %s458 = scalar_select %p457, %s34, 3
          %s459 = scalar_lea.vmem %s5, %s458
        $region52: #{tpu_custom_call.1} parent=27 // pred_fallthru
          _
        // Predicated region
        $region53: #{tpu_custom_call.1} parent=27 // pred_check
          %p460 = pneg %p214
        $region54: #{tpu_custom_call.1} parent=27 // pred_check_branch
          %462 = sbr.rel (%p460) target = $region56
        $region55: #{tpu_custom_call.1} parent=27 // pred_region
          %p463 = scmp.lt.s32.totalorder %s34, 3
          %s464 = scalar_select %p463, %s34, 3
          %s465 = scalar_lea.vmem %s6, %s464
        $region56: #{tpu_custom_call.1} parent=27 // pred_fallthru
          _
        // Predicated region
        $region57: #{tpu_custom_call.1} parent=27 // pred_check
          %p466 = pneg %p240
        $region58: #{tpu_custom_call.1} parent=27 // pred_check_branch
          %468 = sbr.rel (%p466) target = $region60
        $region59: #{tpu_custom_call.1} parent=27 // pred_region
          %p469 = scmp.lt.s32.totalorder %s34, 3
          %s470 = scalar_select %p469, %s34, 3
          %s471 = scalar_lea.vmem %s7, %s470
        $region60: #{tpu_custom_call.1} parent=27 // pred_fallthru
          _
        // Predicated region
        $region61: #{tpu_custom_call.1} parent=27 // pred_check
          %p472 = pneg %p266
        $region62: #{tpu_custom_call.1} parent=27 // pred_check_branch
          %474 = sbr.rel (%p472) target = $region64
        $region63: #{tpu_custom_call.1} parent=27 // pred_region
          %p475 = scmp.lt.s32.totalorder %s34, 3
          %s476 = scalar_select %p475, %s34, 3
          %s477 = smul.addr %s476, 4
          %s478 = scalar_lea.vmem %s8, %s477
        $region64: #{tpu_custom_call.1} parent=27 // pred_fallthru
          _
      $region28: #{tpu_custom_call.1} parent=5 // pred_fallthru
        _
      %p479 = scmp.le.s32.totalorder 1, %s26
      %p480 = scmp.lt.s32.totalorder %s26, 9
      %p481 = pnand %p479, %p480
      %p482 = pneg %p481
      // Predicated region
      $region65: #{tpu_custom_call.1} parent=5 // pred_check
        _
      $region66: #{tpu_custom_call.1} parent=5 // pred_check_branch
        %484 = sbr.rel (%p481) target = $region68
      $region67: #{tpu_custom_call.1} parent=5 // pred_region
        %s485 = ssub.s32 %s26, 1
        %p486 = scmp.lt.s32.totalorder %s35, 1
        %s487 = scalar_select %p486, %s35, 1
        %s488 = smul.addr %s487, 8
        %s489 = scalar_lea.vmem %s0, %s488
        %p490 = pneg %p64
        %p491 = pneg %p61
        %p492 = scmp.lt.s32.totalorder %s35, 1
        %s493 = scalar_select %p492, %s35, 1
        %s494 = scalar_lea.vmem %s1, %s493
        %p495 = pneg %p90
        %p496 = pneg %p87
        %p497 = scmp.lt.s32.totalorder %s36, 3
        %s498 = scalar_select %p497, %s36, 3
        %s499 = smul.addr %s498, 4
        %s500 = smul.addr %s499, 4
        %s501 = scalar_lea.vmem %s2, %s500
        %p502 = pneg %p116
        %p503 = pneg %p113
        %p504 = scmp.lt.s32.totalorder %s36, 3
        %s505 = scalar_select %p504, %s36, 3
        %s506 = smul.addr %s505, 4
        %s507 = smul.addr %s506, 4
        %s508 = scalar_lea.vmem %s3, %s507
        %p509 = pneg %p142
        %p510 = pneg %p139
        %p511 = scmp.lt.s32.totalorder %s36, 3
        %s512 = scalar_select %p511, %s36, 3
        %s513 = smul.addr %s512, 4
        %s514 = smul.addr %s513, 4
        %s515 = scalar_lea.vmem %s4, %s514
        %p516 = pneg %p168
        %p517 = pneg %p165
        %p518 = scmp.lt.s32.totalorder %s36, 3
        %s519 = scalar_select %p518, %s36, 3
        %s520 = scalar_lea.vmem %s5, %s519
        %p521 = pneg %p194
        %p522 = pneg %p191
        %p523 = scmp.lt.s32.totalorder %s36, 3
        %s524 = scalar_select %p523, %s36, 3
        %s525 = scalar_lea.vmem %s6, %s524
        %p526 = pneg %p220
        %p527 = pneg %p217
        %p528 = scmp.lt.s32.totalorder %s36, 3
        %s529 = scalar_select %p528, %s36, 3
        %s530 = scalar_lea.vmem %s7, %s529
        %p531 = pneg %p246
        %p532 = pneg %p243
        %p533 = scmp.lt.s32.totalorder %s36, 3
        %s534 = scalar_select %p533, %s36, 3
        %s535 = smul.addr %s534, 4
        %s536 = scalar_lea.vmem %s8, %s535
        %p537 = pneg %p272
        %p538 = pneg %p269
        %p539 = pneg %p293
        %p540 = pneg %p290
        %p541 = pneg %p314
        %p542 = pneg %p311
        %p543 = pneg %p335
        %p544 = pneg %p332
        %p545 = pneg %p361
        %p546 = pneg %p358
        %s547 = sand.u32 %s348, 1
        %s548 = scalar_lea.sflag [#allocation3], %s547
        %s549 = sand.u32 %s348, 1
        %s550 = smul.addr %s549, 8
        %s551 = scalar_lea.vmem [#allocation2], %s550
        %p552 = pneg %p389
        %p553 = pneg %p386
        %s554 = sand.u32 %s376, 1
        %s555 = scalar_lea.sflag [#allocation5], %s554
        %s556 = sand.u32 %s376, 1
        %s557 = smul.addr %s556, 4
        %s558 = scalar_lea.vmem [#allocation4], %s557
        %p559 = scmp.lt.s32.totalorder %s35, 1
        %s560 = scalar_select %p559, %s35, 1
        %s561 = smul.addr %s560, 8
        %s562 = scalar_lea.vmem %s0, %s561
        %p563 = scmp.lt.s32.totalorder %s35, 1
        %s564 = scalar_select %p563, %s35, 1
        %s565 = scalar_lea.vmem %s1, %s564
        %p566 = scmp.lt.s32.totalorder %s36, 3
        %s567 = scalar_select %p566, %s36, 3
        %s568 = smul.addr %s567, 4
        %s569 = smul.addr %s568, 4
        %s570 = scalar_lea.vmem %s2, %s569
        %p571 = scmp.lt.s32.totalorder %s36, 3
        %s572 = scalar_select %p571, %s36, 3
        %s573 = smul.addr %s572, 4
        %s574 = smul.addr %s573, 4
        %s575 = scalar_lea.vmem %s3, %s574
        %p576 = scmp.lt.s32.totalorder %s36, 3
        %s577 = scalar_select %p576, %s36, 3
        %s578 = smul.addr %s577, 4
        %s579 = smul.addr %s578, 4
        %s580 = scalar_lea.vmem %s4, %s579
        %p581 = scmp.lt.s32.totalorder %s36, 3
        %s582 = scalar_select %p581, %s36, 3
        %s583 = scalar_lea.vmem %s5, %s582
        %p584 = scmp.lt.s32.totalorder %s36, 3
        %s585 = scalar_select %p584, %s36, 3
        %s586 = scalar_lea.vmem %s6, %s585
        %p587 = scmp.lt.s32.totalorder %s36, 3
        %s588 = scalar_select %p587, %s36, 3
        %s589 = scalar_lea.vmem %s7, %s588
        %p590 = scmp.lt.s32.totalorder %s36, 3
        %s591 = scalar_select %p590, %s36, 3
        %s592 = smul.addr %s591, 4
        %s593 = scalar_lea.vmem %s8, %s592
        %v595 = vld [vmem:[%s562] sm:$0xff]
        %v596 = vpack.c.bf16 %v595, %v595
        %v597 = vld [vmem:[%s570] sm:$0xf]
        %v598 = vld [vmem:[%s570 + $0x4] sm:$0xf]
        %v599 = vld [vmem:[%s570 + $0x8] sm:$0xf]
        %v600 = vld [vmem:[%s570 + $0xc] sm:$0xf]
        %v601 = vld [vmem:[%s583] sm:$0x1]
        %v603 = vlaneseq
        %v604 = vshrl.u32 %v603, 7
        %v605 = vsub.s32 0, %v604
        %v606 = vrot.slane %v601, %v605
        %v612 = vunpack.c.l.b16 %v597
        %v613 = vunpack.c.l.b16 %v598
        %v614 = vunpack.c.l.b16 %v599
        %v615 = vunpack.c.l.b16 %v600
        %v616 = vpack.c.b16 %v613, %v612
        %v617 = vpack.c.b16 %v615, %v614
        %vm620 = vcmask 261120
        %v622 = vsel %vm620, %v596, 0
        %624 = vmatprep.subr.bf16.mxu0 0
        %625 = vmatpush1.bf16.msra.mxu0 %v616
        %626 = vmatprep.subr.bf16.mxu0 0
        %627 = vmatpush1.bf16.msra.mxu0 %v617
        %628 = vmatprep.subr.bf16.mxu0 0
        %629 = vmatpush1.bf16.msra.mxu0 0
        %630 = vmatprep.subr.bf16.mxu0 0
        %631 = vmatpush1.bf16.msra.mxu0 0
        %632 = vmatprep.subr.bf16.mxu0 0
        %633 = vmatpush1.bf16.msra.mxu0 0
        %634 = vmatprep.subr.bf16.mxu0 0
        %635 = vmatpush1.bf16.msra.mxu0 0
        %636 = vmatprep.subr.bf16.mxu0 0
        %637 = vmatpush1.bf16.msra.mxu0 0
        %638 = vmatprep.subr.bf16.mxu0 0
        %639 = vmatpush1.bf16.msra.mxu0 0
        %640 = vmatprep.subr.bf16.mxu0 0
        %641 = vmatpush1.bf16.msra.mxu0 0
        %642 = vmatprep.subr.bf16.mxu0 0
        %643 = vmatpush1.bf16.msra.mxu0 0
        %644 = vmatprep.subr.bf16.mxu0 0
        %645 = vmatpush1.bf16.msra.mxu0 0
        %646 = vmatprep.subr.bf16.mxu0 0
        %647 = vmatpush1.bf16.msra.mxu0 0
        %648 = vmatprep.subr.bf16.mxu0 0
        %649 = vmatpush1.bf16.msra.mxu0 0
        %650 = vmatprep.subr.bf16.mxu0 0
        %651 = vmatpush1.bf16.msra.mxu0 0
        %652 = vmatprep.subr.bf16.mxu0 0
        %653 = vmatpush1.bf16.msra.mxu0 0
        %654 = vmatprep.subr.bf16.mxu0 0
        %655 = vmatpush1.bf16.msra.mxu0 0
        %656 = vmatprep.mubr.bf16.mxu0 0
        %657 = vmatmul.mubr.bf16.gmra.mrb[0].mxu0 %v622
        %v658 = vpop.f32.mrb[0].mxu0
        %v659 = vadd.f32 %v606, %v658
        %v660 = vpop.f32.mrb[0].mxu0
        %v661 = vpop.f32.mrb[0].mxu0
        %v662 = vpop.f32.mrb[0].mxu0
        %663 = vdwg.mxu0
        %v664 = vld [vmem:[%s575] sm:$0xf]
        %v665 = vld [vmem:[%s575 + $0x4] sm:$0xf]
        %v666 = vld [vmem:[%s575 + $0x8] sm:$0xf]
        %v667 = vld [vmem:[%s575 + $0xc] sm:$0xf]
        %v668 = vld [vmem:[%s586] sm:$0x1]
        %v670 = vlaneseq
        %v671 = vshrl.u32 %v670, 7
        %v672 = vsub.s32 0, %v671
        %v673 = vrot.slane %v668, %v672
        %v679 = vunpack.c.l.b16 %v664
        %v680 = vunpack.c.l.b16 %v665
        %v681 = vunpack.c.l.b16 %v666
        %v682 = vunpack.c.l.b16 %v667
        %v683 = vpack.c.b16 %v680, %v679
        %v684 = vpack.c.b16 %v682, %v681
        %687 = vmatprep.subr.bf16.mxu0 0
        %688 = vmatpush1.bf16.msra.mxu0 %v683
        %689 = vmatprep.subr.bf16.mxu0 0
        %690 = vmatpush1.bf16.msra.mxu0 %v684
        %691 = vmatprep.subr.bf16.mxu0 0
        %692 = vmatpush1.bf16.msra.mxu0 0
        %693 = vmatprep.subr.bf16.mxu0 0
        %694 = vmatpush1.bf16.msra.mxu0 0
        %695 = vmatprep.subr.bf16.mxu0 0
        %696 = vmatpush1.bf16.msra.mxu0 0
        %697 = vmatprep.subr.bf16.mxu0 0
        %698 = vmatpush1.bf16.msra.mxu0 0
        %699 = vmatprep.subr.bf16.mxu0 0
        %700 = vmatpush1.bf16.msra.mxu0 0
        %701 = vmatprep.subr.bf16.mxu0 0
        %702 = vmatpush1.bf16.msra.mxu0 0
        %703 = vmatprep.subr.bf16.mxu0 0
        %704 = vmatpush1.bf16.msra.mxu0 0
        %705 = vmatprep.subr.bf16.mxu0 0
        %706 = vmatpush1.bf16.msra.mxu0 0
        %707 = vmatprep.subr.bf16.mxu0 0
        %708 = vmatpush1.bf16.msra.mxu0 0
        %709 = vmatprep.subr.bf16.mxu0 0
        %710 = vmatpush1.bf16.msra.mxu0 0
        %711 = vmatprep.subr.bf16.mxu0 0
        %712 = vmatpush1.bf16.msra.mxu0 0
        %713 = vmatprep.subr.bf16.mxu0 0
        %714 = vmatpush1.bf16.msra.mxu0 0
        %715 = vmatprep.subr.bf16.mxu0 0
        %716 = vmatpush1.bf16.msra.mxu0 0
        %717 = vmatprep.subr.bf16.mxu0 0
        %718 = vmatpush1.bf16.msra.mxu0 0
        %719 = vmatprep.mubr.bf16.mxu0 0
        %720 = vmatmul.mubr.bf16.gmra.mrb[0].mxu0 %v622
        %v721 = vpop.f32.mrb[0].mxu0
        %v722 = vadd.f32 %v673, %v721
        %v723 = vpop.f32.mrb[0].mxu0
        %v724 = vpop.f32.mrb[0].mxu0
        %v725 = vpop.f32.mrb[0].mxu0
        %726 = vdwg.mxu0
        %v727 = vld [vmem:[%s580] sm:$0xf]
        %v728 = vld [vmem:[%s580 + $0x4] sm:$0xf]
        %v729 = vld [vmem:[%s580 + $0x8] sm:$0xf]
        %v730 = vld [vmem:[%s580 + $0xc] sm:$0xf]
        %v731 = vld [vmem:[%s589] sm:$0x1]
        %v733 = vlaneseq
        %v734 = vshrl.u32 %v733, 7
        %v735 = vsub.s32 0, %v734
        %v736 = vrot.slane %v731, %v735
        %v742 = vunpack.c.l.b16 %v727
        %v743 = vunpack.c.l.b16 %v728
        %v744 = vunpack.c.l.b16 %v729
        %v745 = vunpack.c.l.b16 %v730
        %v746 = vpack.c.b16 %v743, %v742
        %v747 = vpack.c.b16 %v745, %v744
        %750 = vmatprep.subr.bf16.mxu0 0
        %751 = vmatpush1.bf16.msra.mxu0 %v746
        %752 = vmatprep.subr.bf16.mxu0 0
        %753 = vmatpush1.bf16.msra.mxu0 %v747
        %754 = vmatprep.subr.bf16.mxu0 0
        %755 = vmatpush1.bf16.msra.mxu0 0
        %756 = vmatprep.subr.bf16.mxu0 0
        %757 = vmatpush1.bf16.msra.mxu0 0
        %758 = vmatprep.subr.bf16.mxu0 0
        %759 = vmatpush1.bf16.msra.mxu0 0
        %760 = vmatprep.subr.bf16.mxu0 0
        %761 = vmatpush1.bf16.msra.mxu0 0
        %762 = vmatprep.subr.bf16.mxu0 0
        %763 = vmatpush1.bf16.msra.mxu0 0
        %764 = vmatprep.subr.bf16.mxu0 0
        %765 = vmatpush1.bf16.msra.mxu0 0
        %766 = vmatprep.subr.bf16.mxu0 0
        %767 = vmatpush1.bf16.msra.mxu0 0
        %768 = vmatprep.subr.bf16.mxu0 0
        %769 = vmatpush1.bf16.msra.mxu0 0
        %770 = vmatprep.subr.bf16.mxu0 0
        %771 = vmatpush1.bf16.msra.mxu0 0
        %772 = vmatprep.subr.bf16.mxu0 0
        %773 = vmatpush1.bf16.msra.mxu0 0
        %774 = vmatprep.subr.bf16.mxu0 0
        %775 = vmatpush1.bf16.msra.mxu0 0
        %776 = vmatprep.subr.bf16.mxu0 0
        %777 = vmatpush1.bf16.msra.mxu0 0
        %778 = vmatprep.subr.bf16.mxu0 0
        %779 = vmatpush1.bf16.msra.mxu0 0
        %780 = vmatprep.subr.bf16.mxu0 0
        %781 = vmatpush1.bf16.msra.mxu0 0
        %782 = vmatprep.mubr.bf16.mxu0 0
        %783 = vmatmul.mubr.bf16.gmra.mrb[0].mxu0 %v622
        %v784 = vpop.f32.mrb[0].mxu0
        %v785 = vadd.f32 %v736, %v784
        %v786 = vpop.f32.mrb[0].mxu0
        %v787 = vpop.f32.mrb[0].mxu0
        %v788 = vpop.f32.mrb[0].mxu0
        %789 = vdwg.mxu0
        %v790 = vpack.c.bf16 %v659, %v659
        %v791 = vpack.c.bf16 %v722, %v722
        %v792 = vpack.c.bf16 %v785, %v785
        %vm793 = vcmask 64512
        %v795 = vsel %vm793, %v790, 0
        %v798 = vsel %vm793, %v791, 0
        %800 = vmatprep.subr.bf16.mxu0 0
        %801 = vmatpush1.bf16.xpose.msra.mxu0 %v798
        %802 = vmatprep.subr.bf16.mxu0 0
        %803 = vmatpush1.bf16.xpose.msra.mxu0 0
        %804 = vmatprep.subr.bf16.mxu0 0
        %805 = vmatpush1.bf16.xpose.msra.mxu0 0
        %806 = vmatprep.subr.bf16.mxu0 0
        %807 = vmatpush1.bf16.xpose.msra.mxu0 0
        %808 = vmatprep.subr.bf16.mxu0 0
        %809 = vmatpush1.bf16.xpose.msra.mxu0 0
        %810 = vmatprep.subr.bf16.mxu0 0
        %811 = vmatpush1.bf16.xpose.msra.mxu0 0
        %812 = vmatprep.subr.bf16.mxu0 0
        %813 = vmatpush1.bf16.xpose.msra.mxu0 0
        %814 = vmatprep.subr.bf16.mxu0 0
        %815 = vmatpush1.bf16.xpose.msra.mxu0 0
        %816 = vmatprep.subr.bf16.mxu0 0
        %817 = vmatpush1.bf16.xpose.msra.mxu0 0
        %818 = vmatprep.subr.bf16.mxu0 0
        %819 = vmatpush1.bf16.xpose.msra.mxu0 0
        %820 = vmatprep.subr.bf16.mxu0 0
        %821 = vmatpush1.bf16.xpose.msra.mxu0 0
        %822 = vmatprep.subr.bf16.mxu0 0
        %823 = vmatpush1.bf16.xpose.msra.mxu0 0
        %824 = vmatprep.subr.bf16.mxu0 0
        %825 = vmatpush1.bf16.xpose.msra.mxu0 0
        %826 = vmatprep.subr.bf16.mxu0 0
        %827 = vmatpush1.bf16.xpose.msra.mxu0 0
        %828 = vmatprep.subr.bf16.mxu0 0
        %829 = vmatpush1.bf16.xpose.msra.mxu0 0
        %830 = vmatprep.subr.bf16.mxu0 0
        %831 = vmatpush1.bf16.xpose.msra.mxu0 0
        %832 = vmatprep.mubr.bf16.mxu0 0
        %833 = vmatmul.mubr.bf16.gmra.mrb[0].mxu0 %v795
        %v834 = vpop.f32.mrb[0].mxu0
        %v835 = vadd.f32 0.0, %v834
        %v836 = vpop.f32.mrb[0].mxu0
        %v837 = vpop.f32.mrb[0].mxu0
        %v838 = vpop.f32.mrb[0].mxu0
        %839 = vdwg.mxu0
        %v840 = vld [vmem:[%s565] sm:$0x1]
        %vm841 = vcmp.eq.f32.partialorder %v840, 0.0
        %v842 = vsel %vm841, 1, 0
        %v843 = vlaneseq
        %v844 = vshrl.u32 %v843, 7
        %v845 = vsub.s32 0, %v844
        %v846 = vrot.slane %v842, %v845
        %vm847 = vcmp.eq.s32.totalorder %v846, 1
        %v848 = vsel %vm847, -1e+09, %v835
        %v849 = vsel %vm793, %v848, -inf
        %850 = vmax.xlane.f32.xlu0 %v849
        %v851 = vpop.xlane.xlu0 %850
        %v852 = vsub.f32 %v848, %v851
        %v853 = vmul.f32 %v852, 1.442695
        %v854 = vpow.pop %v853
        %v855 = vsel %vm793, %v854, 0.0
        %856 = vadd.xlane.f32.xlu0 %v855
        %v857 = vpop.xlane.xlu0 %856
        %v858 = vrcp.pop %v857
        %v859 = vmul.f32 %v854, %v858
        %v860 = vpack.c.bf16 %v859, %v859
        %vm861 = vcmask 60416
        %862 = vst.msk [vmem:[%s558] sm:$0xf] %vm861, %v860
        %v864 = vsel %vm793, %v860, 0
        %vm866 = vcmask 1043456
        %v868 = vsel %vm866, %v792, 0
        %870 = vmatprep.subr.bf16.mxu0 0
        %871 = vmatpush1.bf16.msra.mxu0 %v868
        %872 = vmatprep.subr.bf16.mxu0 0
        %873 = vmatpush1.bf16.msra.mxu0 0
        %874 = vmatprep.subr.bf16.mxu0 0
        %875 = vmatpush1.bf16.msra.mxu0 0
        %876 = vmatprep.subr.bf16.mxu0 0
        %877 = vmatpush1.bf16.msra.mxu0 0
        %878 = vmatprep.subr.bf16.mxu0 0
        %879 = vmatpush1.bf16.msra.mxu0 0
        %880 = vmatprep.subr.bf16.mxu0 0
        %881 = vmatpush1.bf16.msra.mxu0 0
        %882 = vmatprep.subr.bf16.mxu0 0
        %883 = vmatpush1.bf16.msra.mxu0 0
        %884 = vmatprep.subr.bf16.mxu0 0
        %885 = vmatpush1.bf16.msra.mxu0 0
        %886 = vmatprep.subr.bf16.mxu0 0
        %887 = vmatpush1.bf16.msra.mxu0 0
        %888 = vmatprep.subr.bf16.mxu0 0
        %889 = vmatpush1.bf16.msra.mxu0 0
        %890 = vmatprep.subr.bf16.mxu0 0
        %891 = vmatpush1.bf16.msra.mxu0 0
        %892 = vmatprep.subr.bf16.mxu0 0
        %893 = vmatpush1.bf16.msra.mxu0 0
        %894 = vmatprep.subr.bf16.mxu0 0
        %895 = vmatpush1.bf16.msra.mxu0 0
        %896 = vmatprep.subr.bf16.mxu0 0
        %897 = vmatpush1.bf16.msra.mxu0 0
        %898 = vmatprep.subr.bf16.mxu0 0
        %899 = vmatpush1.bf16.msra.mxu0 0
        %900 = vmatprep.subr.bf16.mxu0 0
        %901 = vmatpush1.bf16.msra.mxu0 0
        %902 = vmatprep.mubr.bf16.mxu0 0
        %903 = vmatmul.mubr.bf16.gmra.mrb[0].mxu0 %v864
        %v904 = vpop.f32.mrb[0].mxu0
        %v905 = vadd.f32 0.0, %v904
        %v906 = vpop.f32.mrb[0].mxu0
        %v907 = vpop.f32.mrb[0].mxu0
        %v908 = vpop.f32.mrb[0].mxu0
        %909 = vdwg.mxu0
        %v910 = vpack.c.bf16 %v905, %v905
        %v911 = vld [vmem:[%s593] sm:$0xf]
        %v913 = vsel %vm793, %v910, 0
        %v916 = vsel %vm866, %v911, 0
        %918 = vmatprep.subr.bf16.mxu0 0
        %919 = vmatpush1.bf16.msra.mxu0 %v916
        %920 = vmatprep.subr.bf16.mxu0 0
        %921 = vmatpush1.bf16.msra.mxu0 0
        %922 = vmatprep.subr.bf16.mxu0 0
        %923 = vmatpush1.bf16.msra.mxu0 0
        %924 = vmatprep.subr.bf16.mxu0 0
        %925 = vmatpush1.bf16.msra.mxu0 0
        %926 = vmatprep.subr.bf16.mxu0 0
        %927 = vmatpush1.bf16.msra.mxu0 0
        %928 = vmatprep.subr.bf16.mxu0 0
        %929 = vmatpush1.bf16.msra.mxu0 0
        %930 = vmatprep.subr.bf16.mxu0 0
        %931 = vmatpush1.bf16.msra.mxu0 0
        %932 = vmatprep.subr.bf16.mxu0 0
        %933 = vmatpush1.bf16.msra.mxu0 0
        %934 = vmatprep.subr.bf16.mxu0 0
        %935 = vmatpush1.bf16.msra.mxu0 0
        %936 = vmatprep.subr.bf16.mxu0 0
        %937 = vmatpush1.bf16.msra.mxu0 0
        %938 = vmatprep.subr.bf16.mxu0 0
        %939 = vmatpush1.bf16.msra.mxu0 0
        %940 = vmatprep.subr.bf16.mxu0 0
        %941 = vmatpush1.bf16.msra.mxu0 0
        %942 = vmatprep.subr.bf16.mxu0 0
        %943 = vmatpush1.bf16.msra.mxu0 0
        %944 = vmatprep.subr.bf16.mxu0 0
        %945 = vmatpush1.bf16.msra.mxu0 0
        %946 = vmatprep.subr.bf16.mxu0 0
        %947 = vmatpush1.bf16.msra.mxu0 0
        %948 = vmatprep.subr.bf16.mxu0 0
        %949 = vmatpush1.bf16.msra.mxu0 0
        %950 = vmatprep.mubr.bf16.mxu0 0
        %951 = vmatmul.mubr.bf16.gmra.mrb[0].mxu0 %v913
        %v952 = vpop.f32.mrb[0].mxu0
        %v953 = vadd.f32 0.0, %v952
        %v954 = vpop.f32.mrb[0].mxu0
        %v955 = vpop.f32.mrb[0].mxu0
        %v956 = vpop.f32.mrb[0].mxu0
        %957 = vdwg.mxu0
        %p958 = scmp.eq.s32.totalorder %s36, 0
        // Predicated region
        $region69: #{tpu_custom_call.1} parent=67 // pred_check
          %p959 = pneg %p958
        $region70: #{tpu_custom_call.1} parent=67 // pred_check_branch
          %961 = sbr.rel (%p959) target = $region72
        $region71: #{tpu_custom_call.1} parent=67 // pred_region
          %962 = vst.msk [vmem:[%s551] sm:$0xff] %vm620, %v953
        $region72: #{tpu_custom_call.1} parent=67 // pred_fallthru
          _
        %p963 = scmp.ne.s32.totalorder %s36, 0
        // Predicated region
        $region73: #{tpu_custom_call.1} parent=67 // pred_check
          %p964 = pneg %p963
        $region74: #{tpu_custom_call.1} parent=67 // pred_check_branch
          %966 = sbr.rel (%p964) target = $region76
        $region75: #{tpu_custom_call.1} parent=67 // pred_region
          %v967 = vld [vmem:[%s551] sm:$0xff]
          %v968 = vadd.f32 %v967, %v953
          %969 = vst.msk [vmem:[%s551] sm:$0xff] %vm620, %v968
        $region76: #{tpu_custom_call.1} parent=67 // pred_fallthru
          _
        %p970 = scmp.eq.s32.totalorder %s36, 3
        // Predicated region
        $region77: #{tpu_custom_call.1} parent=67 // pred_check
          %p971 = pneg %p970
        $region78: #{tpu_custom_call.1} parent=67 // pred_check_branch
          %973 = sbr.rel (%p971) target = $region80
        $region79: #{tpu_custom_call.1} parent=67 // pred_region
          %v974 = vld [vmem:[%s551] sm:$0xff]
          %v975 = vld [vmem:[%s9] sm:$0x1]
          %v977 = vlaneseq
          %v978 = vshrl.u32 %v977, 7
          %v979 = vsub.s32 0, %v978
          %v980 = vrot.slane %v975, %v979
          %v982 = vadd.f32 %v974, %v980
          %v983 = vld [vmem:[%s562] sm:$0xff]
          %v984 = vadd.f32 %v982, %v983
          %v985 = vsel %vm620, %v984, 0.0
          %986 = vadd.xlane.f32.xlu0 %v985
          %v987 = vpop.xlane.xlu0 %986
          %v988 = vrcp.pop 32.0
          %v989 = vmul.f32 %v987, %v988
          %v990 = vsub.f32 %v984, %v989
          %v991 = vmul.f32 %v990, %v990
          %v992 = vsel %vm620, %v991, 0.0
          %993 = vadd.xlane.f32.xlu0 %v992
          %v994 = vpop.xlane.xlu0 %993
          %v995 = vmul.f32 %v994, %v988
          %v996 = vadd.f32 %v995, 1e-05
          %v997 = vrsqrt.pop %v996
          %v998 = vmul.f32 %v990, %v997
          %v999 = vld [vmem:[%s10] sm:$0x1]
          %v1001 = vlaneseq
          %v1002 = vshrl.u32 %v1001, 7
          %v1003 = vsub.s32 0, %v1002
          %v1004 = vrot.slane %v999, %v1003
          %v1006 = vmul.f32 %v998, %v1004
          %v1007 = vld [vmem:[%s11] sm:$0x1]
          %v1009 = vlaneseq
          %v1010 = vshrl.u32 %v1009, 7
          %v1011 = vsub.s32 0, %v1010
          %v1012 = vrot.slane %v1007, %v1011
          %v1014 = vadd.f32 %v1006, %v1012
          %1015 = vst.msk [vmem:[%s551] sm:$0xff] %vm620, %v1014
        $region80: #{tpu_custom_call.1} parent=67 // pred_fallthru
          _
        %s1016 = sand.u32 %s348, 1
        %s1017 = scalar_lea.sflag [#allocation3], %s1016
        %s1018 = sand.u32 %s348, 1
        %s1019 = smul.addr %s1018, 8
        %s1020 = scalar_lea.vmem [#allocation2], %s1019
        %s1021 = sand.u32 %s376, 1
        %s1022 = scalar_lea.sflag [#allocation5], %s1021
        %s1023 = sand.u32 %s376, 1
        %s1024 = smul.addr %s1023, 4
        %s1025 = scalar_lea.vmem [#allocation4], %s1024
        // Predicated region
        $region81: #{tpu_custom_call.1} parent=67 // pred_check
          %p1026 = pneg %p358
        $region82: #{tpu_custom_call.1} parent=67 // pred_check_branch
          %1028 = sbr.rel (%p1026) target = $region84
        $region83: #{tpu_custom_call.1} parent=67 // pred_region
          %s1030 = ssub.s32 128, 128
          %1031 = vsyncadd %s1017, %s1030
          %s1032 = smul.addr %s35, 128
          %s1033 = scalar_lea.hbm %s12, %s1032
          %s1035 = sshll.u32 %s1020, 4
          %s1036 = int_to_ptr.vmem [resolvable:$true] %s1035
          %1038 = dma.vmem_to_hbm [thread:$0]  %s1036, 128, %s1033, %s1017
        $region84: #{tpu_custom_call.1} parent=67 // pred_fallthru
          _
        // Predicated region
        $region85: #{tpu_custom_call.1} parent=67 // pred_check
          %p1039 = pneg %p386
        $region86: #{tpu_custom_call.1} parent=67 // pred_check_branch
          %1041 = sbr.rel (%p1039) target = $region88
        $region87: #{tpu_custom_call.1} parent=67 // pred_region
          %s1043 = ssub.s32 64, 64
          %1044 = vsyncadd %s1022, %s1043
          %s1045 = smul.addr %s35, 4
          %s1046 = sadd.s32 %s36, %s1045
          %s1047 = smul.addr %s1046, 64
          %s1048 = scalar_lea.hbm %s13, %s1047
          %s1050 = sshll.u32 %s1025, 4
          %s1051 = int_to_ptr.vmem [resolvable:$true] %s1050
          %1053 = dma.vmem_to_hbm [thread:$0]  %s1051, 64, %s1048, %s1022
        $region88: #{tpu_custom_call.1} parent=67 // pred_fallthru
          _
      $region68: #{tpu_custom_call.1} parent=5 // pred_fallthru
        _
      %p1054 = scmp.le.s32.totalorder 2, %s26
      // Predicated region
      $region89: #{tpu_custom_call.1} parent=5 // pred_check
        %p1055 = pneg %p1054
      $region90: #{tpu_custom_call.1} parent=5 // pred_check_branch
        %1057 = sbr.rel (%p1055) target = $region92
      $region91: #{tpu_custom_call.1} parent=5 // pred_region
        %s1058 = ssub.s32 %s26, 2
        // Predicated region
        $region93: #{tpu_custom_call.1} parent=91 // pred_check
          %p1059 = pneg %p364
        $region94: #{tpu_custom_call.1} parent=91 // pred_check_branch
          %1061 = sbr.rel (%p1059) target = $region96
        $region95: #{tpu_custom_call.1} parent=91 // pred_region
          %s1062 = sand.u32 %s349, 1
          %s1063 = scalar_lea.sflag [#allocation3], %s1062
          %s1064 = sand.u32 %s349, 1
          %s1065 = smul.addr %s1064, 8
          %s1066 = scalar_lea.vmem [#allocation2], %s1065
          %1067 = dma.done %s1063, 128
        $region96: #{tpu_custom_call.1} parent=91 // pred_fallthru
          _
        // Predicated region
        $region97: #{tpu_custom_call.1} parent=91 // pred_check
          %p1068 = pneg %p392
        $region98: #{tpu_custom_call.1} parent=91 // pred_check_branch
          %1070 = sbr.rel (%p1068) target = $region100
        $region99: #{tpu_custom_call.1} parent=91 // pred_region
          %s1071 = sand.u32 %s377, 1
          %s1072 = scalar_lea.sflag [#allocation5], %s1071
          %s1073 = sand.u32 %s377, 1
          %s1074 = smul.addr %s1073, 4
          %s1075 = scalar_lea.vmem [#allocation4], %s1074
          %1076 = dma.done %s1072, 64
        $region100: #{tpu_custom_call.1} parent=91 // pred_fallthru
          _
      $region92: #{tpu_custom_call.1} parent=5 // pred_fallthru
        _
    $region6: #{tpu_custom_call.1} parent=1 // loop_footer
      %s30 = sadd.s32 1, %s26
    $region7: #{tpu_custom_call.1} parent=1 // loop_footer_branch
      %25 = sbr.rel target = $region3
    $region8: #{tpu_custom_call.1} parent=1 // loop_exit
      _
    %1077 = vsyncpa [#allocation3], 1
    %s1078 = scalar_lea.sflag [#allocation3], 1
    %1079 = vsyncpa %s1078, 1
    %1080 = vsyncpa [#allocation5], 1
    %s1081 = scalar_lea.sflag [#allocation5], 1
    %1082 = vsyncpa %s1081, 1

</llo_original>
